<compile_context>
chip_gen: v7x
topology: tpu7x:2x2x1
jax: 0.10.0
libtpu: 0.0.40
codegen_flags: <defaults>
</compile_context>

<pallas_src>
import functools

import jax
import jax.numpy as jnp
from jax import lax
from jax.experimental import pallas as pl
from jax.experimental.pallas import tpu as pltpu

KSIZE = 7
PAD = 3


def _round_up(x, m):
    return ((x + m - 1) // m) * m


def _conv7x7_kernel(x_ref, w_ref, b_ref, o_ref, patch_ref, *, wp):
    # x_ref:     (Cin_p, L)   flat, zero-padded image; spatial on LANES
    # w_ref:     (Cout_p, K)  K = 49*Cin_p, row order (kh, kw, ci)
    # b_ref:     (Cout_p, 1)  bias (f32)
    # o_ref:     (Cout_p, P)  lane-dense output tile (P multiple of 128)
    # patch_ref: (K, P)       VMEM scratch, lane-dense im2col patch matrix
    cin_p = x_ref.shape[0]
    p = o_ref.shape[-1]

    # im2col: each tap is a pure lane shift of the flat image.  Static lane
    # offset -> XLU shift; destination is a full-width, 8-aligned sublane band
    # -> dense stores.  Every row/lane of patch_ref is rewritten each step, so
    # no zero-init of the (uninitialized) scratch is needed.
    for kh in range(KSIZE):
        for kw in range(KSIZE):
            t = kh * KSIZE + kw
            s = kh * wp + kw
            patch_ref[t * cin_p:(t + 1) * cin_p, :] = x_ref[:, s:s + p]

    # Entire 7x7xCin conv as ONE MXU matmul, K = 49*Cin_p, f32 accumulation.
    acc = jnp.dot(w_ref[...], patch_ref[...],
                  preferred_element_type=jnp.float32)
    o_ref[...] = (acc + b_ref[...]).astype(o_ref.dtype)


def feature_map_block(x_nchw, weight_oihw, bias, *, compute_dtype=None):
    """Conv2d(kernel=7, padding=3, padding_mode='reflect').

    x_nchw:      (N, Cin, H, W)
    weight_oihw: (Cout, Cin, 7, 7)   (PyTorch layout)
    bias:        (Cout,)
    compute_dtype: optional MXU operand dtype (e.g. jnp.bfloat16 on v6e/v7x);
                   accumulation is always f32, output keeps the input dtype.
                   NOTE: bf16 operands loosen accuracy vs the f32 reference.
    returns      (N, Cout, H, W)
    """
    N, Cin, H, W = x_nchw.shape
    Cout = weight_oihw.shape[0]
    assert H >= PAD + 1 and W >= PAD + 1, "reflect padding requires H, W >= 4"
    if compute_dtype is None:
        compute_dtype = x_nchw.dtype
    out_dtype = x_nchw.dtype

    Hp, Wp = H + 2 * PAD, W + 2 * PAD
    Cin_p = _round_up(Cin, 8)            # sublane-aligned channel count
    Cout_p = _round_up(Cout, 8)          # dense output stores
    K = KSIZE * KSIZE * Cin_p
    P = _round_up(H * Wp, 128)           # lane-dense patch/output width
    max_shift = (KSIZE - 1) * Wp + (KSIZE - 1)
    L = _round_up(max_shift + P, 128)    # flat input length (shift headroom)

    # Reflect-pad in NCHW (identical semantics to PyTorch 'reflect'), then
    # flatten spatial onto lanes and zero-pad channels->Cin_p, lanes->L.
    x_pad = jnp.pad(
        x_nchw, ((0, 0), (0, 0), (PAD, PAD), (PAD, PAD)), mode="reflect")
    x_flat = x_pad.reshape(N, Cin, Hp * Wp).astype(compute_dtype)
    x_flat = jnp.pad(x_flat, ((0, 0), (0, Cin_p - Cin), (0, L - Hp * Wp)))

    # Weights flattened once: (Cout, Cin, 7, 7) -> (Cout_p, 49*Cin_p) with row
    # order (kh, kw, ci); padded channels/rows are zero so padded patch rows
    # (which hold zeros from the padded input) contribute nothing.
    w_t = jnp.transpose(weight_oihw, (0, 2, 3, 1))          # (Cout, 7, 7, Cin)
    w_t = jnp.pad(w_t, ((0, Cout_p - Cout), (0, 0), (0, 0), (0, Cin_p - Cin)))
    w2d = w_t.reshape(Cout_p, K).astype(compute_dtype)
    b2d = jnp.pad(bias, (0, Cout_p - Cout)).reshape(Cout_p, 1).astype(
        jnp.float32)

    kernel = functools.partial(_conv7x7_kernel, wp=Wp)

    out_raw = pl.pallas_call(
        kernel,
        out_shape=jax.ShapeDtypeStruct((N, Cout_p, P), out_dtype),
        grid_spec=pltpu.PrefetchScalarGridSpec(
            num_scalar_prefetch=0,
            grid=(N,),  # one image per step; "parallel" -> both TCs fed on v7x
            in_specs=[
                pl.BlockSpec((pl.Squeezed(), Cin_p, L), lambda n: (n, 0, 0)),
                pl.BlockSpec((Cout_p, K), lambda n: (0, 0)),
                pl.BlockSpec((Cout_p, 1), lambda n: (0, 0)),
            ],
            out_specs=pl.BlockSpec(
                (pl.Squeezed(), Cout_p, P), lambda n: (n, 0, 0)),
            scratch_shapes=[pltpu.VMEM((K, P), compute_dtype)],
        ),
        compiler_params=pltpu.CompilerParams(
            dimension_semantics=("parallel",),
        ),
    )(x_flat, w2d, b2d)

    # Crop: lane q = h*Wp + w (keep w < W), drop padded output channels.
    out = out_raw[:, :Cout, :H * Wp].reshape(N, Cout, H, Wp)[:, :, :, :W]
    return out


def _reference(x_nchw, weight_oihw, bias):
    """Pure-JAX reference (lax conv, full f32 precision) for correctness check."""
    x_pad = jnp.pad(
        x_nchw, ((0, 0), (0, 0), (PAD, PAD), (PAD, PAD)), mode="reflect")
    out = lax.conv_general_dilated(
        x_pad.astype(jnp.float32),
        weight_oihw.astype(jnp.float32),
        window_strides=(1, 1),
        padding="VALID",
        dimension_numbers=("NCHW", "OIHW", "NCHW"),
        precision=lax.Precision.HIGHEST,
    ) + bias.astype(jnp.float32)[None, :, None, None]
    return out.astype(x_nchw.dtype)


if __name__ == "__main__":
    # Small shapes consistent with the module's forward.
    N, Cin, Cout, H, W = 2, 4, 3, 16, 16

    key = jax.random.PRNGKey(0)
    kx, kwt, kb = jax.random.split(key, 3)

    x = jax.random.normal(kx, (N, Cin, H, W), dtype=jnp.float32)
    # Conv2d-style init: weight (Cout, Cin, 7, 7), bias (Cout,).
    fan_in = Cin * KSIZE * KSIZE
    bound = 1.0 / (fan_in ** 0.5)
    weight = jax.random.uniform(
        kwt, (Cout, Cin, KSIZE, KSIZE), dtype=jnp.float32,
        minval=-bound, maxval=bound,
    )
    bias = jax.random.uniform(
        kb, (Cout,), dtype=jnp.float32, minval=-bound, maxval=bound)

    out = jax.block_until_ready(feature_map_block(x, weight, bias))
    ref = jax.block_until_ready(_reference(x, weight, bias))

    assert out.shape == (N, Cout, H, W)
    assert jnp.allclose(out, ref, atol=1e-4, rtol=1e-4)

    print("KERNEL_OK")
</pallas_src>

<mosaic_0001>
module attributes {stable_mosaic.version = 11 : i64} {
  func.func @_conv7x7_kernel(%arg0: i32, %arg1: memref<1x8x640xf32, #tpu.memory_space<vmem>>, %arg2: memref<8x392xf32, #tpu.memory_space<vmem>>, %arg3: memref<8x1xf32, #tpu.memory_space<vmem>>, %arg4: memref<1x8x384xf32, #tpu.memory_space<vmem>>, %arg5: memref<392x384xf32, #tpu.memory_space<vmem>>) attributes {dimension_semantics = [#tpu.dimension_semantics<parallel>], iteration_bounds = array<i64: 2>, scalar_prefetch = 0 : i64, scratch_operands = 1 : i64, tpu.core_type = #tpu.core_type<tc>, window_params = [{transform_indices = @transform_0, window_bounds = array<i64: 1, 8, 640>}, {pipeline_mode = #tpu.pipeline_mode<synchronous>, transform_indices = @transform_1, window_bounds = array<i64: 8, 392>}, {pipeline_mode = #tpu.pipeline_mode<synchronous>, transform_indices = @transform_2, window_bounds = array<i64: 8, 1>}, {transform_indices = @transform_3, window_bounds = array<i64: 1, 8, 384>}]} {
    %c0 = arith.constant 0 : index
    %c0_0 = arith.constant 0 : index
    %c0_1 = arith.constant 0 : index
    %0 = vector.load %arg1[%c0, %c0_0, %c0_1] : memref<1x8x640xf32, #tpu.memory_space<vmem>>, vector<1x8x384xf32>
    %1 = vector.shape_cast %0 : vector<1x8x384xf32> to vector<8x384xf32>
    %c0_2 = arith.constant 0 : index
    %c0_3 = arith.constant 0 : index
    %2 = vector.load %arg5[%c0_2, %c0_3] : memref<392x384xf32, #tpu.memory_space<vmem>>, vector<8x384xf32>
    tpu.vector_store %arg5[%c0_2, %c0_3], %1 {strides = array<i32>} : memref<392x384xf32, #tpu.memory_space<vmem>>, vector<8x384xf32>,
    %c0_4 = arith.constant 0 : index
    %c0_5 = arith.constant 0 : index
    %c1 = arith.constant 1 : index
    %3 = vector.load %arg1[%c0_4, %c0_5, %c1] : memref<1x8x640xf32, #tpu.memory_space<vmem>>, vector<1x8x384xf32>
    %4 = vector.shape_cast %3 : vector<1x8x384xf32> to vector<8x384xf32>
    %c8 = arith.constant 8 : index
    %c0_6 = arith.constant 0 : index
    %5 = vector.load %arg5[%c8, %c0_6] : memref<392x384xf32, #tpu.memory_space<vmem>>, vector<8x384xf32>
    tpu.vector_store %arg5[%c8, %c0_6], %4 {strides = array<i32>} : memref<392x384xf32, #tpu.memory_space<vmem>>, vector<8x384xf32>,
    %c0_7 = arith.constant 0 : index
    %c0_8 = arith.constant 0 : index
    %c2 = arith.constant 2 : index
    %6 = vector.load %arg1[%c0_7, %c0_8, %c2] : memref<1x8x640xf32, #tpu.memory_space<vmem>>, vector<1x8x384xf32>
    %7 = vector.shape_cast %6 : vector<1x8x384xf32> to vector<8x384xf32>
    %c16 = arith.constant 16 : index
    %c0_9 = arith.constant 0 : index
    %8 = vector.load %arg5[%c16, %c0_9] : memref<392x384xf32, #tpu.memory_space<vmem>>, vector<8x384xf32>
    tpu.vector_store %arg5[%c16, %c0_9], %7 {strides = array<i32>} : memref<392x384xf32, #tpu.memory_space<vmem>>, vector<8x384xf32>,
    %c0_10 = arith.constant 0 : index
    %c0_11 = arith.constant 0 : index
    %c3 = arith.constant 3 : index
    %9 = vector.load %arg1[%c0_10, %c0_11, %c3] : memref<1x8x640xf32, #tpu.memory_space<vmem>>, vector<1x8x384xf32>
    %10 = vector.shape_cast %9 : vector<1x8x384xf32> to vector<8x384xf32>
    %c24 = arith.constant 24 : index
    %c0_12 = arith.constant 0 : index
    %11 = vector.load %arg5[%c24, %c0_12] : memref<392x384xf32, #tpu.memory_space<vmem>>, vector<8x384xf32>
    tpu.vector_store %arg5[%c24, %c0_12], %10 {strides = array<i32>} : memref<392x384xf32, #tpu.memory_space<vmem>>, vector<8x384xf32>,
    %c0_13 = arith.constant 0 : index
    %c0_14 = arith.constant 0 : index
    %c4 = arith.constant 4 : index
    %12 = vector.load %arg1[%c0_13, %c0_14, %c4] : memref<1x8x640xf32, #tpu.memory_space<vmem>>, vector<1x8x384xf32>
    %13 = vector.shape_cast %12 : vector<1x8x384xf32> to vector<8x384xf32>
    %c32 = arith.constant 32 : index
    %c0_15 = arith.constant 0 : index
    %14 = vector.load %arg5[%c32, %c0_15] : memref<392x384xf32, #tpu.memory_space<vmem>>, vector<8x384xf32>
    tpu.vector_store %arg5[%c32, %c0_15], %13 {strides = array<i32>} : memref<392x384xf32, #tpu.memory_space<vmem>>, vector<8x384xf32>,
    %c0_16 = arith.constant 0 : index
    %c0_17 = arith.constant 0 : index
    %c5 = arith.constant 5 : index
    %15 = vector.load %arg1[%c0_16, %c0_17, %c5] : memref<1x8x640xf32, #tpu.memory_space<vmem>>, vector<1x8x384xf32>
    %16 = vector.shape_cast %15 : vector<1x8x384xf32> to vector<8x384xf32>
    %c40 = arith.constant 40 : index
    %c0_18 = arith.constant 0 : index
    %17 = vector.load %arg5[%c40, %c0_18] : memref<392x384xf32, #tpu.memory_space<vmem>>, vector<8x384xf32>
    tpu.vector_store %arg5[%c40, %c0_18], %16 {strides = array<i32>} : memref<392x384xf32, #tpu.memory_space<vmem>>, vector<8x384xf32>,
    %c0_19 = arith.constant 0 : index
    %c0_20 = arith.constant 0 : index
    %c6 = arith.constant 6 : index
    %18 = vector.load %arg1[%c0_19, %c0_20, %c6] : memref<1x8x640xf32, #tpu.memory_space<vmem>>, vector<1x8x384xf32>
    %19 = vector.shape_cast %18 : vector<1x8x384xf32> to vector<8x384xf32>
    %c48 = arith.constant 48 : index
    %c0_21 = arith.constant 0 : index
    %20 = vector.load %arg5[%c48, %c0_21] : memref<392x384xf32, #tpu.memory_space<vmem>>, vector<8x384xf32>
    tpu.vector_store %arg5[%c48, %c0_21], %19 {strides = array<i32>} : memref<392x384xf32, #tpu.memory_space<vmem>>, vector<8x384xf32>,
    %c0_22 = arith.constant 0 : index
    %c0_23 = arith.constant 0 : index
    %c22 = arith.constant 22 : index
    %21 = vector.load %arg1[%c0_22, %c0_23, %c22] : memref<1x8x640xf32, #tpu.memory_space<vmem>>, vector<1x8x384xf32>
    %22 = vector.shape_cast %21 : vector<1x8x384xf32> to vector<8x384xf32>
    %c56 = arith.constant 56 : index
    %c0_24 = arith.constant 0 : index
    %23 = vector.load %arg5[%c56, %c0_24] : memref<392x384xf32, #tpu.memory_space<vmem>>, vector<8x384xf32>
    tpu.vector_store %arg5[%c56, %c0_24], %22 {strides = array<i32>} : memref<392x384xf32, #tpu.memory_space<vmem>>, vector<8x384xf32>,
    %c0_25 = arith.constant 0 : index
    %c0_26 = arith.constant 0 : index
    %c23 = arith.constant 23 : index
    %24 = vector.load %arg1[%c0_25, %c0_26, %c23] : memref<1x8x640xf32, #tpu.memory_space<vmem>>, vector<1x8x384xf32>
    %25 = vector.shape_cast %24 : vector<1x8x384xf32> to vector<8x384xf32>
    %c64 = arith.constant 64 : index
    %c0_27 = arith.constant 0 : index
    %26 = vector.load %arg5[%c64, %c0_27] : memref<392x384xf32, #tpu.memory_space<vmem>>, vector<8x384xf32>
    tpu.vector_store %arg5[%c64, %c0_27], %25 {strides = array<i32>} : memref<392x384xf32, #tpu.memory_space<vmem>>, vector<8x384xf32>,
    %c0_28 = arith.constant 0 : index
    %c0_29 = arith.constant 0 : index
    %c24_30 = arith.constant 24 : index
    %27 = vector.load %arg1[%c0_28, %c0_29, %c24_30] : memref<1x8x640xf32, #tpu.memory_space<vmem>>, vector<1x8x384xf32>
    %28 = vector.shape_cast %27 : vector<1x8x384xf32> to vector<8x384xf32>
    %c72 = arith.constant 72 : index
    %c0_31 = arith.constant 0 : index
    %29 = vector.load %arg5[%c72, %c0_31] : memref<392x384xf32, #tpu.memory_space<vmem>>, vector<8x384xf32>
    tpu.vector_store %arg5[%c72, %c0_31], %28 {strides = array<i32>} : memref<392x384xf32, #tpu.memory_space<vmem>>, vector<8x384xf32>,
    %c0_32 = arith.constant 0 : index
    %c0_33 = arith.constant 0 : index
    %c25 = arith.constant 25 : index
    %30 = vector.load %arg1[%c0_32, %c0_33, %c25] : memref<1x8x640xf32, #tpu.memory_space<vmem>>, vector<1x8x384xf32>
    %31 = vector.shape_cast %30 : vector<1x8x384xf32> to vector<8x384xf32>
    %c80 = arith.constant 80 : index
    %c0_34 = arith.constant 0 : index
    %32 = vector.load %arg5[%c80, %c0_34] : memref<392x384xf32, #tpu.memory_space<vmem>>, vector<8x384xf32>
    tpu.vector_store %arg5[%c80, %c0_34], %31 {strides = array<i32>} : memref<392x384xf32, #tpu.memory_space<vmem>>, vector<8x384xf32>,
    %c0_35 = arith.constant 0 : index
    %c0_36 = arith.constant 0 : index
    %c26 = arith.constant 26 : index
    %33 = vector.load %arg1[%c0_35, %c0_36, %c26] : memref<1x8x640xf32, #tpu.memory_space<vmem>>, vector<1x8x384xf32>
    %34 = vector.shape_cast %33 : vector<1x8x384xf32> to vector<8x384xf32>
    %c88 = arith.constant 88 : index
    %c0_37 = arith.constant 0 : index
    %35 = vector.load %arg5[%c88, %c0_37] : memref<392x384xf32, #tpu.memory_space<vmem>>, vector<8x384xf32>
    tpu.vector_store %arg5[%c88, %c0_37], %34 {strides = array<i32>} : memref<392x384xf32, #tpu.memory_space<vmem>>, vector<8x384xf32>,
    %c0_38 = arith.constant 0 : index
    %c0_39 = arith.constant 0 : index
    %c27 = arith.constant 27 : index
    %36 = vector.load %arg1[%c0_38, %c0_39, %c27] : memref<1x8x640xf32, #tpu.memory_space<vmem>>, vector<1x8x384xf32>
    %37 = vector.shape_cast %36 : vector<1x8x384xf32> to vector<8x384xf32>
    %c96 = arith.constant 96 : index
    %c0_40 = arith.constant 0 : index
    %38 = vector.load %arg5[%c96, %c0_40] : memref<392x384xf32, #tpu.memory_space<vmem>>, vector<8x384xf32>
    tpu.vector_store %arg5[%c96, %c0_40], %37 {strides = array<i32>} : memref<392x384xf32, #tpu.memory_space<vmem>>, vector<8x384xf32>,
    %c0_41 = arith.constant 0 : index
    %c0_42 = arith.constant 0 : index
    %c28 = arith.constant 28 : index
    %39 = vector.load %arg1[%c0_41, %c0_42, %c28] : memref<1x8x640xf32, #tpu.memory_space<vmem>>, vector<1x8x384xf32>
    %40 = vector.shape_cast %39 : vector<1x8x384xf32> to vector<8x384xf32>
    %c104 = arith.constant 104 : index
    %c0_43 = arith.constant 0 : index
    %41 = vector.load %arg5[%c104, %c0_43] : memref<392x384xf32, #tpu.memory_space<vmem>>, vector<8x384xf32>
    tpu.vector_store %arg5[%c104, %c0_43], %40 {strides = array<i32>} : memref<392x384xf32, #tpu.memory_space<vmem>>, vector<8x384xf32>,
    %c0_44 = arith.constant 0 : index
    %c0_45 = arith.constant 0 : index
    %c44 = arith.constant 44 : index
    %42 = vector.load %arg1[%c0_44, %c0_45, %c44] : memref<1x8x640xf32, #tpu.memory_space<vmem>>, vector<1x8x384xf32>
    %43 = vector.shape_cast %42 : vector<1x8x384xf32> to vector<8x384xf32>
    %c112 = arith.constant 112 : index
    %c0_46 = arith.constant 0 : index
    %44 = vector.load %arg5[%c112, %c0_46] : memref<392x384xf32, #tpu.memory_space<vmem>>, vector<8x384xf32>
    tpu.vector_store %arg5[%c112, %c0_46], %43 {strides = array<i32>} : memref<392x384xf32, #tpu.memory_space<vmem>>, vector<8x384xf32>,
    %c0_47 = arith.constant 0 : index
    %c0_48 = arith.constant 0 : index
    %c45 = arith.constant 45 : index
    %45 = vector.load %arg1[%c0_47, %c0_48, %c45] : memref<1x8x640xf32, #tpu.memory_space<vmem>>, vector<1x8x384xf32>
    %46 = vector.shape_cast %45 : vector<1x8x384xf32> to vector<8x384xf32>
    %c120 = arith.constant 120 : index
    %c0_49 = arith.constant 0 : index
    %47 = vector.load %arg5[%c120, %c0_49] : memref<392x384xf32, #tpu.memory_space<vmem>>, vector<8x384xf32>
    tpu.vector_store %arg5[%c120, %c0_49], %46 {strides = array<i32>} : memref<392x384xf32, #tpu.memory_space<vmem>>, vector<8x384xf32>,
    %c0_50 = arith.constant 0 : index
    %c0_51 = arith.constant 0 : index
    %c46 = arith.constant 46 : index
    %48 = vector.load %arg1[%c0_50, %c0_51, %c46] : memref<1x8x640xf32, #tpu.memory_space<vmem>>, vector<1x8x384xf32>
    %49 = vector.shape_cast %48 : vector<1x8x384xf32> to vector<8x384xf32>
    %c128 = arith.constant 128 : index
    %c0_52 = arith.constant 0 : index
    %50 = vector.load %arg5[%c128, %c0_52] : memref<392x384xf32, #tpu.memory_space<vmem>>, vector<8x384xf32>
    tpu.vector_store %arg5[%c128, %c0_52], %49 {strides = array<i32>} : memref<392x384xf32, #tpu.memory_space<vmem>>, vector<8x384xf32>,
    %c0_53 = arith.constant 0 : index
    %c0_54 = arith.constant 0 : index
    %c47 = arith.constant 47 : index
    %51 = vector.load %arg1[%c0_53, %c0_54, %c47] : memref<1x8x640xf32, #tpu.memory_space<vmem>>, vector<1x8x384xf32>
    %52 = vector.shape_cast %51 : vector<1x8x384xf32> to vector<8x384xf32>
    %c136 = arith.constant 136 : index
    %c0_55 = arith.constant 0 : index
    %53 = vector.load %arg5[%c136, %c0_55] : memref<392x384xf32, #tpu.memory_space<vmem>>, vector<8x384xf32>
    tpu.vector_store %arg5[%c136, %c0_55], %52 {strides = array<i32>} : memref<392x384xf32, #tpu.memory_space<vmem>>, vector<8x384xf32>,
    %c0_56 = arith.constant 0 : index
    %c0_57 = arith.constant 0 : index
    %c48_58 = arith.constant 48 : index
    %54 = vector.load %arg1[%c0_56, %c0_57, %c48_58] : memref<1x8x640xf32, #tpu.memory_space<vmem>>, vector<1x8x384xf32>
    %55 = vector.shape_cast %54 : vector<1x8x384xf32> to vector<8x384xf32>
    %c144 = arith.constant 144 : index
    %c0_59 = arith.constant 0 : index
    %56 = vector.load %arg5[%c144, %c0_59] : memref<392x384xf32, #tpu.memory_space<vmem>>, vector<8x384xf32>
    tpu.vector_store %arg5[%c144, %c0_59], %55 {strides = array<i32>} : memref<392x384xf32, #tpu.memory_space<vmem>>, vector<8x384xf32>,
    %c0_60 = arith.constant 0 : index
    %c0_61 = arith.constant 0 : index
    %c49 = arith.constant 49 : index
    %57 = vector.load %arg1[%c0_60, %c0_61, %c49] : memref<1x8x640xf32, #tpu.memory_space<vmem>>, vector<1x8x384xf32>
    %58 = vector.shape_cast %57 : vector<1x8x384xf32> to vector<8x384xf32>
    %c152 = arith.constant 152 : index
    %c0_62 = arith.constant 0 : index
    %59 = vector.load %arg5[%c152, %c0_62] : memref<392x384xf32, #tpu.memory_space<vmem>>, vector<8x384xf32>
    tpu.vector_store %arg5[%c152, %c0_62], %58 {strides = array<i32>} : memref<392x384xf32, #tpu.memory_space<vmem>>, vector<8x384xf32>,
    %c0_63 = arith.constant 0 : index
    %c0_64 = arith.constant 0 : index
    %c50 = arith.constant 50 : index
    %60 = vector.load %arg1[%c0_63, %c0_64, %c50] : memref<1x8x640xf32, #tpu.memory_space<vmem>>, vector<1x8x384xf32>
    %61 = vector.shape_cast %60 : vector<1x8x384xf32> to vector<8x384xf32>
    %c160 = arith.constant 160 : index
    %c0_65 = arith.constant 0 : index
    %62 = vector.load %arg5[%c160, %c0_65] : memref<392x384xf32, #tpu.memory_space<vmem>>, vector<8x384xf32>
    tpu.vector_store %arg5[%c160, %c0_65], %61 {strides = array<i32>} : memref<392x384xf32, #tpu.memory_space<vmem>>, vector<8x384xf32>,
    %c0_66 = arith.constant 0 : index
    %c0_67 = arith.constant 0 : index
    %c66 = arith.constant 66 : index
    %63 = vector.load %arg1[%c0_66, %c0_67, %c66] : memref<1x8x640xf32, #tpu.memory_space<vmem>>, vector<1x8x384xf32>
    %64 = vector.shape_cast %63 : vector<1x8x384xf32> to vector<8x384xf32>
    %c168 = arith.constant 168 : index
    %c0_68 = arith.constant 0 : index
    %65 = vector.load %arg5[%c168, %c0_68] : memref<392x384xf32, #tpu.memory_space<vmem>>, vector<8x384xf32>
    tpu.vector_store %arg5[%c168, %c0_68], %64 {strides = array<i32>} : memref<392x384xf32, #tpu.memory_space<vmem>>, vector<8x384xf32>,
    %c0_69 = arith.constant 0 : index
    %c0_70 = arith.constant 0 : index
    %c67 = arith.constant 67 : index
    %66 = vector.load %arg1[%c0_69, %c0_70, %c67] : memref<1x8x640xf32, #tpu.memory_space<vmem>>, vector<1x8x384xf32>
    %67 = vector.shape_cast %66 : vector<1x8x384xf32> to vector<8x384xf32>
    %c176 = arith.constant 176 : index
    %c0_71 = arith.constant 0 : index
    %68 = vector.load %arg5[%c176, %c0_71] : memref<392x384xf32, #tpu.memory_space<vmem>>, vector<8x384xf32>
    tpu.vector_store %arg5[%c176, %c0_71], %67 {strides = array<i32>} : memref<392x384xf32, #tpu.memory_space<vmem>>, vector<8x384xf32>,
    %c0_72 = arith.constant 0 : index
    %c0_73 = arith.constant 0 : index
    %c68 = arith.constant 68 : index
    %69 = vector.load %arg1[%c0_72, %c0_73, %c68] : memref<1x8x640xf32, #tpu.memory_space<vmem>>, vector<1x8x384xf32>
    %70 = vector.shape_cast %69 : vector<1x8x384xf32> to vector<8x384xf32>
    %c184 = arith.constant 184 : index
    %c0_74 = arith.constant 0 : index
    %71 = vector.load %arg5[%c184, %c0_74] : memref<392x384xf32, #tpu.memory_space<vmem>>, vector<8x384xf32>
    tpu.vector_store %arg5[%c184, %c0_74], %70 {strides = array<i32>} : memref<392x384xf32, #tpu.memory_space<vmem>>, vector<8x384xf32>,
    %c0_75 = arith.constant 0 : index
    %c0_76 = arith.constant 0 : index
    %c69 = arith.constant 69 : index
    %72 = vector.load %arg1[%c0_75, %c0_76, %c69] : memref<1x8x640xf32, #tpu.memory_space<vmem>>, vector<1x8x384xf32>
    %73 = vector.shape_cast %72 : vector<1x8x384xf32> to vector<8x384xf32>
    %c192 = arith.constant 192 : index
    %c0_77 = arith.constant 0 : index
    %74 = vector.load %arg5[%c192, %c0_77] : memref<392x384xf32, #tpu.memory_space<vmem>>, vector<8x384xf32>
    tpu.vector_store %arg5[%c192, %c0_77], %73 {strides = array<i32>} : memref<392x384xf32, #tpu.memory_space<vmem>>, vector<8x384xf32>,
    %c0_78 = arith.constant 0 : index
    %c0_79 = arith.constant 0 : index
    %c70 = arith.constant 70 : index
    %75 = vector.load %arg1[%c0_78, %c0_79, %c70] : memref<1x8x640xf32, #tpu.memory_space<vmem>>, vector<1x8x384xf32>
    %76 = vector.shape_cast %75 : vector<1x8x384xf32> to vector<8x384xf32>
    %c200 = arith.constant 200 : index
    %c0_80 = arith.constant 0 : index
    %77 = vector.load %arg5[%c200, %c0_80] : memref<392x384xf32, #tpu.memory_space<vmem>>, vector<8x384xf32>
    tpu.vector_store %arg5[%c200, %c0_80], %76 {strides = array<i32>} : memref<392x384xf32, #tpu.memory_space<vmem>>, vector<8x384xf32>,
    %c0_81 = arith.constant 0 : index
    %c0_82 = arith.constant 0 : index
    %c71 = arith.constant 71 : index
    %78 = vector.load %arg1[%c0_81, %c0_82, %c71] : memref<1x8x640xf32, #tpu.memory_space<vmem>>, vector<1x8x384xf32>
    %79 = vector.shape_cast %78 : vector<1x8x384xf32> to vector<8x384xf32>
    %c208 = arith.constant 208 : index
    %c0_83 = arith.constant 0 : index
    %80 = vector.load %arg5[%c208, %c0_83] : memref<392x384xf32, #tpu.memory_space<vmem>>, vector<8x384xf32>
    tpu.vector_store %arg5[%c208, %c0_83], %79 {strides = array<i32>} : memref<392x384xf32, #tpu.memory_space<vmem>>, vector<8x384xf32>,
    %c0_84 = arith.constant 0 : index
    %c0_85 = arith.constant 0 : index
    %c72_86 = arith.constant 72 : index
    %81 = vector.load %arg1[%c0_84, %c0_85, %c72_86] : memref<1x8x640xf32, #tpu.memory_space<vmem>>, vector<1x8x384xf32>
    %82 = vector.shape_cast %81 : vector<1x8x384xf32> to vector<8x384xf32>
    %c216 = arith.constant 216 : index
    %c0_87 = arith.constant 0 : index
    %83 = vector.load %arg5[%c216, %c0_87] : memref<392x384xf32, #tpu.memory_space<vmem>>, vector<8x384xf32>
    tpu.vector_store %arg5[%c216, %c0_87], %82 {strides = array<i32>} : memref<392x384xf32, #tpu.memory_space<vmem>>, vector<8x384xf32>,
    %c0_88 = arith.constant 0 : index
    %c0_89 = arith.constant 0 : index
    %c88_90 = arith.constant 88 : index
    %84 = vector.load %arg1[%c0_88, %c0_89, %c88_90] : memref<1x8x640xf32, #tpu.memory_space<vmem>>, vector<1x8x384xf32>
    %85 = vector.shape_cast %84 : vector<1x8x384xf32> to vector<8x384xf32>
    %c224 = arith.constant 224 : index
    %c0_91 = arith.constant 0 : index
    %86 = vector.load %arg5[%c224, %c0_91] : memref<392x384xf32, #tpu.memory_space<vmem>>, vector<8x384xf32>
    tpu.vector_store %arg5[%c224, %c0_91], %85 {strides = array<i32>} : memref<392x384xf32, #tpu.memory_space<vmem>>, vector<8x384xf32>,
    %c0_92 = arith.constant 0 : index
    %c0_93 = arith.constant 0 : index
    %c89 = arith.constant 89 : index
    %87 = vector.load %arg1[%c0_92, %c0_93, %c89] : memref<1x8x640xf32, #tpu.memory_space<vmem>>, vector<1x8x384xf32>
    %88 = vector.shape_cast %87 : vector<1x8x384xf32> to vector<8x384xf32>
    %c232 = arith.constant 232 : index
    %c0_94 = arith.constant 0 : index
    %89 = vector.load %arg5[%c232, %c0_94] : memref<392x384xf32, #tpu.memory_space<vmem>>, vector<8x384xf32>
    tpu.vector_store %arg5[%c232, %c0_94], %88 {strides = array<i32>} : memref<392x384xf32, #tpu.memory_space<vmem>>, vector<8x384xf32>,
    %c0_95 = arith.constant 0 : index
    %c0_96 = arith.constant 0 : index
    %c90 = arith.constant 90 : index
    %90 = vector.load %arg1[%c0_95, %c0_96, %c90] : memref<1x8x640xf32, #tpu.memory_space<vmem>>, vector<1x8x384xf32>
    %91 = vector.shape_cast %90 : vector<1x8x384xf32> to vector<8x384xf32>
    %c240 = arith.constant 240 : index
    %c0_97 = arith.constant 0 : index
    %92 = vector.load %arg5[%c240, %c0_97] : memref<392x384xf32, #tpu.memory_space<vmem>>, vector<8x384xf32>
    tpu.vector_store %arg5[%c240, %c0_97], %91 {strides = array<i32>} : memref<392x384xf32, #tpu.memory_space<vmem>>, vector<8x384xf32>,
    %c0_98 = arith.constant 0 : index
    %c0_99 = arith.constant 0 : index
    %c91 = arith.constant 91 : index
    %93 = vector.load %arg1[%c0_98, %c0_99, %c91] : memref<1x8x640xf32, #tpu.memory_space<vmem>>, vector<1x8x384xf32>
    %94 = vector.shape_cast %93 : vector<1x8x384xf32> to vector<8x384xf32>
    %c248 = arith.constant 248 : index
    %c0_100 = arith.constant 0 : index
    %95 = vector.load %arg5[%c248, %c0_100] : memref<392x384xf32, #tpu.memory_space<vmem>>, vector<8x384xf32>
    tpu.vector_store %arg5[%c248, %c0_100], %94 {strides = array<i32>} : memref<392x384xf32, #tpu.memory_space<vmem>>, vector<8x384xf32>,
    %c0_101 = arith.constant 0 : index
    %c0_102 = arith.constant 0 : index
    %c92 = arith.constant 92 : index
    %96 = vector.load %arg1[%c0_101, %c0_102, %c92] : memref<1x8x640xf32, #tpu.memory_space<vmem>>, vector<1x8x384xf32>
    %97 = vector.shape_cast %96 : vector<1x8x384xf32> to vector<8x384xf32>
    %c256 = arith.constant 256 : index
    %c0_103 = arith.constant 0 : index
    %98 = vector.load %arg5[%c256, %c0_103] : memref<392x384xf32, #tpu.memory_space<vmem>>, vector<8x384xf32>
    tpu.vector_store %arg5[%c256, %c0_103], %97 {strides = array<i32>} : memref<392x384xf32, #tpu.memory_space<vmem>>, vector<8x384xf32>,
    %c0_104 = arith.constant 0 : index
    %c0_105 = arith.constant 0 : index
    %c93 = arith.constant 93 : index
    %99 = vector.load %arg1[%c0_104, %c0_105, %c93] : memref<1x8x640xf32, #tpu.memory_space<vmem>>, vector<1x8x384xf32>
    %100 = vector.shape_cast %99 : vector<1x8x384xf32> to vector<8x384xf32>
    %c264 = arith.constant 264 : index
    %c0_106 = arith.constant 0 : index
    %101 = vector.load %arg5[%c264, %c0_106] : memref<392x384xf32, #tpu.memory_space<vmem>>, vector<8x384xf32>
    tpu.vector_store %arg5[%c264, %c0_106], %100 {strides = array<i32>} : memref<392x384xf32, #tpu.memory_space<vmem>>, vector<8x384xf32>,
    %c0_107 = arith.constant 0 : index
    %c0_108 = arith.constant 0 : index
    %c94 = arith.constant 94 : index
    %102 = vector.load %arg1[%c0_107, %c0_108, %c94] : memref<1x8x640xf32, #tpu.memory_space<vmem>>, vector<1x8x384xf32>
    %103 = vector.shape_cast %102 : vector<1x8x384xf32> to vector<8x384xf32>
    %c272 = arith.constant 272 : index
    %c0_109 = arith.constant 0 : index
    %104 = vector.load %arg5[%c272, %c0_109] : memref<392x384xf32, #tpu.memory_space<vmem>>, vector<8x384xf32>
    tpu.vector_store %arg5[%c272, %c0_109], %103 {strides = array<i32>} : memref<392x384xf32, #tpu.memory_space<vmem>>, vector<8x384xf32>,
    %c0_110 = arith.constant 0 : index
    %c0_111 = arith.constant 0 : index
    %c110 = arith.constant 110 : index
    %105 = vector.load %arg1[%c0_110, %c0_111, %c110] : memref<1x8x640xf32, #tpu.memory_space<vmem>>, vector<1x8x384xf32>
    %106 = vector.shape_cast %105 : vector<1x8x384xf32> to vector<8x384xf32>
    %c280 = arith.constant 280 : index
    %c0_112 = arith.constant 0 : index
    %107 = vector.load %arg5[%c280, %c0_112] : memref<392x384xf32, #tpu.memory_space<vmem>>, vector<8x384xf32>
    tpu.vector_store %arg5[%c280, %c0_112], %106 {strides = array<i32>} : memref<392x384xf32, #tpu.memory_space<vmem>>, vector<8x384xf32>,
    %c0_113 = arith.constant 0 : index
    %c0_114 = arith.constant 0 : index
    %c111 = arith.constant 111 : index
    %108 = vector.load %arg1[%c0_113, %c0_114, %c111] : memref<1x8x640xf32, #tpu.memory_space<vmem>>, vector<1x8x384xf32>
    %109 = vector.shape_cast %108 : vector<1x8x384xf32> to vector<8x384xf32>
    %c288 = arith.constant 288 : index
    %c0_115 = arith.constant 0 : index
    %110 = vector.load %arg5[%c288, %c0_115] : memref<392x384xf32, #tpu.memory_space<vmem>>, vector<8x384xf32>
    tpu.vector_store %arg5[%c288, %c0_115], %109 {strides = array<i32>} : memref<392x384xf32, #tpu.memory_space<vmem>>, vector<8x384xf32>,
    %c0_116 = arith.constant 0 : index
    %c0_117 = arith.constant 0 : index
    %c112_118 = arith.constant 112 : index
    %111 = vector.load %arg1[%c0_116, %c0_117, %c112_118] : memref<1x8x640xf32, #tpu.memory_space<vmem>>, vector<1x8x384xf32>
    %112 = vector.shape_cast %111 : vector<1x8x384xf32> to vector<8x384xf32>
    %c296 = arith.constant 296 : index
    %c0_119 = arith.constant 0 : index
    %113 = vector.load %arg5[%c296, %c0_119] : memref<392x384xf32, #tpu.memory_space<vmem>>, vector<8x384xf32>
    tpu.vector_store %arg5[%c296, %c0_119], %112 {strides = array<i32>} : memref<392x384xf32, #tpu.memory_space<vmem>>, vector<8x384xf32>,
    %c0_120 = arith.constant 0 : index
    %c0_121 = arith.constant 0 : index
    %c113 = arith.constant 113 : index
    %114 = vector.load %arg1[%c0_120, %c0_121, %c113] : memref<1x8x640xf32, #tpu.memory_space<vmem>>, vector<1x8x384xf32>
    %115 = vector.shape_cast %114 : vector<1x8x384xf32> to vector<8x384xf32>
    %c304 = arith.constant 304 : index
    %c0_122 = arith.constant 0 : index
    %116 = vector.load %arg5[%c304, %c0_122] : memref<392x384xf32, #tpu.memory_space<vmem>>, vector<8x384xf32>
    tpu.vector_store %arg5[%c304, %c0_122], %115 {strides = array<i32>} : memref<392x384xf32, #tpu.memory_space<vmem>>, vector<8x384xf32>,
    %c0_123 = arith.constant 0 : index
    %c0_124 = arith.constant 0 : index
    %c114 = arith.constant 114 : index
    %117 = vector.load %arg1[%c0_123, %c0_124, %c114] : memref<1x8x640xf32, #tpu.memory_space<vmem>>, vector<1x8x384xf32>
    %118 = vector.shape_cast %117 : vector<1x8x384xf32> to vector<8x384xf32>
    %c312 = arith.constant 312 : index
    %c0_125 = arith.constant 0 : index
    %119 = vector.load %arg5[%c312, %c0_125] : memref<392x384xf32, #tpu.memory_space<vmem>>, vector<8x384xf32>
    tpu.vector_store %arg5[%c312, %c0_125], %118 {strides = array<i32>} : memref<392x384xf32, #tpu.memory_space<vmem>>, vector<8x384xf32>,
    %c0_126 = arith.constant 0 : index
    %c0_127 = arith.constant 0 : index
    %c115 = arith.constant 115 : index
    %120 = vector.load %arg1[%c0_126, %c0_127, %c115] : memref<1x8x640xf32, #tpu.memory_space<vmem>>, vector<1x8x384xf32>
    %121 = vector.shape_cast %120 : vector<1x8x384xf32> to vector<8x384xf32>
    %c320 = arith.constant 320 : index
    %c0_128 = arith.constant 0 : index
    %122 = vector.load %arg5[%c320, %c0_128] : memref<392x384xf32, #tpu.memory_space<vmem>>, vector<8x384xf32>
    tpu.vector_store %arg5[%c320, %c0_128], %121 {strides = array<i32>} : memref<392x384xf32, #tpu.memory_space<vmem>>, vector<8x384xf32>,
    %c0_129 = arith.constant 0 : index
    %c0_130 = arith.constant 0 : index
    %c116 = arith.constant 116 : index
    %123 = vector.load %arg1[%c0_129, %c0_130, %c116] : memref<1x8x640xf32, #tpu.memory_space<vmem>>, vector<1x8x384xf32>
    %124 = vector.shape_cast %123 : vector<1x8x384xf32> to vector<8x384xf32>
    %c328 = arith.constant 328 : index
    %c0_131 = arith.constant 0 : index
    %125 = vector.load %arg5[%c328, %c0_131] : memref<392x384xf32, #tpu.memory_space<vmem>>, vector<8x384xf32>
    tpu.vector_store %arg5[%c328, %c0_131], %124 {strides = array<i32>} : memref<392x384xf32, #tpu.memory_space<vmem>>, vector<8x384xf32>,
    %c0_132 = arith.constant 0 : index
    %c0_133 = arith.constant 0 : index
    %c132 = arith.constant 132 : index
    %126 = vector.load %arg1[%c0_132, %c0_133, %c132] : memref<1x8x640xf32, #tpu.memory_space<vmem>>, vector<1x8x384xf32>
    %127 = vector.shape_cast %126 : vector<1x8x384xf32> to vector<8x384xf32>
    %c336 = arith.constant 336 : index
    %c0_134 = arith.constant 0 : index
    %128 = vector.load %arg5[%c336, %c0_134] : memref<392x384xf32, #tpu.memory_space<vmem>>, vector<8x384xf32>
    tpu.vector_store %arg5[%c336, %c0_134], %127 {strides = array<i32>} : memref<392x384xf32, #tpu.memory_space<vmem>>, vector<8x384xf32>,
    %c0_135 = arith.constant 0 : index
    %c0_136 = arith.constant 0 : index
    %c133 = arith.constant 133 : index
    %129 = vector.load %arg1[%c0_135, %c0_136, %c133] : memref<1x8x640xf32, #tpu.memory_space<vmem>>, vector<1x8x384xf32>
    %130 = vector.shape_cast %129 : vector<1x8x384xf32> to vector<8x384xf32>
    %c344 = arith.constant 344 : index
    %c0_137 = arith.constant 0 : index
    %131 = vector.load %arg5[%c344, %c0_137] : memref<392x384xf32, #tpu.memory_space<vmem>>, vector<8x384xf32>
    tpu.vector_store %arg5[%c344, %c0_137], %130 {strides = array<i32>} : memref<392x384xf32, #tpu.memory_space<vmem>>, vector<8x384xf32>,
    %c0_138 = arith.constant 0 : index
    %c0_139 = arith.constant 0 : index
    %c134 = arith.constant 134 : index
    %132 = vector.load %arg1[%c0_138, %c0_139, %c134] : memref<1x8x640xf32, #tpu.memory_space<vmem>>, vector<1x8x384xf32>
    %133 = vector.shape_cast %132 : vector<1x8x384xf32> to vector<8x384xf32>
    %c352 = arith.constant 352 : index
    %c0_140 = arith.constant 0 : index
    %134 = vector.load %arg5[%c352, %c0_140] : memref<392x384xf32, #tpu.memory_space<vmem>>, vector<8x384xf32>
    tpu.vector_store %arg5[%c352, %c0_140], %133 {strides = array<i32>} : memref<392x384xf32, #tpu.memory_space<vmem>>, vector<8x384xf32>,
    %c0_141 = arith.constant 0 : index
    %c0_142 = arith.constant 0 : index
    %c135 = arith.constant 135 : index
    %135 = vector.load %arg1[%c0_141, %c0_142, %c135] : memref<1x8x640xf32, #tpu.memory_space<vmem>>, vector<1x8x384xf32>
    %136 = vector.shape_cast %135 : vector<1x8x384xf32> to vector<8x384xf32>
    %c360 = arith.constant 360 : index
    %c0_143 = arith.constant 0 : index
    %137 = vector.load %arg5[%c360, %c0_143] : memref<392x384xf32, #tpu.memory_space<vmem>>, vector<8x384xf32>
    tpu.vector_store %arg5[%c360, %c0_143], %136 {strides = array<i32>} : memref<392x384xf32, #tpu.memory_space<vmem>>, vector<8x384xf32>,
    %c0_144 = arith.constant 0 : index
    %c0_145 = arith.constant 0 : index
    %c136_146 = arith.constant 136 : index
    %138 = vector.load %arg1[%c0_144, %c0_145, %c136_146] : memref<1x8x640xf32, #tpu.memory_space<vmem>>, vector<1x8x384xf32>
    %139 = vector.shape_cast %138 : vector<1x8x384xf32> to vector<8x384xf32>
    %c368 = arith.constant 368 : index
    %c0_147 = arith.constant 0 : index
    %140 = vector.load %arg5[%c368, %c0_147] : memref<392x384xf32, #tpu.memory_space<vmem>>, vector<8x384xf32>
    tpu.vector_store %arg5[%c368, %c0_147], %139 {strides = array<i32>} : memref<392x384xf32, #tpu.memory_space<vmem>>, vector<8x384xf32>,
    %c0_148 = arith.constant 0 : index
    %c0_149 = arith.constant 0 : index
    %c137 = arith.constant 137 : index
    %141 = vector.load %arg1[%c0_148, %c0_149, %c137] : memref<1x8x640xf32, #tpu.memory_space<vmem>>, vector<1x8x384xf32>
    %142 = vector.shape_cast %141 : vector<1x8x384xf32> to vector<8x384xf32>
    %c376 = arith.constant 376 : index
    %c0_150 = arith.constant 0 : index
    %143 = vector.load %arg5[%c376, %c0_150] : memref<392x384xf32, #tpu.memory_space<vmem>>, vector<8x384xf32>
    tpu.vector_store %arg5[%c376, %c0_150], %142 {strides = array<i32>} : memref<392x384xf32, #tpu.memory_space<vmem>>, vector<8x384xf32>,
    %c0_151 = arith.constant 0 : index
    %c0_152 = arith.constant 0 : index
    %c138 = arith.constant 138 : index
    %144 = vector.load %arg1[%c0_151, %c0_152, %c138] : memref<1x8x640xf32, #tpu.memory_space<vmem>>, vector<1x8x384xf32>
    %145 = vector.shape_cast %144 : vector<1x8x384xf32> to vector<8x384xf32>
    %c384 = arith.constant 384 : index
    %c0_153 = arith.constant 0 : index
    %146 = vector.load %arg5[%c384, %c0_153] : memref<392x384xf32, #tpu.memory_space<vmem>>, vector<8x384xf32>
    tpu.vector_store %arg5[%c384, %c0_153], %145 {strides = array<i32>} : memref<392x384xf32, #tpu.memory_space<vmem>>, vector<8x384xf32>,
    %c0_154 = arith.constant 0 : index
    %c0_155 = arith.constant 0 : index
    %147 = vector.load %arg2[%c0_154, %c0_155] : memref<8x392xf32, #tpu.memory_space<vmem>>, vector<8x392xf32>
    %c0_156 = arith.constant 0 : index
    %c0_157 = arith.constant 0 : index
    %148 = vector.load %arg5[%c0_156, %c0_157] : memref<392x384xf32, #tpu.memory_space<vmem>>, vector<392x384xf32>
    %cst = arith.constant dense<0.000000e+00> : vector<8x384xf32>
    %149 = tpu.matmul %147, %148, %cst {dimension_numbers = #tpu.dot_dimension_numbers<[1], [0], [0], [1], [0, 0, 1, 1], [], []>} : vector<8x392xf32>, vector<392x384xf32>, vector<8x384xf32> -> vector<8x384xf32>
    %c0_158 = arith.constant 0 : index
    %c0_159 = arith.constant 0 : index
    %150 = vector.load %arg3[%c0_158, %c0_159] : memref<8x1xf32, #tpu.memory_space<vmem>>, vector<8x1xf32>
    %151 = vector.broadcast %150 : vector<8x1xf32> to vector<8x384xf32>
    %152 = arith.addf %149, %151 : vector<8x384xf32>
    %c0_160 = arith.constant 0 : index
    %c0_161 = arith.constant 0 : index
    %c0_162 = arith.constant 0 : index
    %153 = vector.load %arg4[%c0_160, %c0_161, %c0_162] : memref<1x8x384xf32, #tpu.memory_space<vmem>>, vector<1x8x384xf32>
    %154 = vector.shape_cast %153 : vector<1x8x384xf32> to vector<8x384xf32>
    %155 = vector.shape_cast %152 : vector<8x384xf32> to vector<1x8x384xf32>
    tpu.vector_store %arg4[%c0_160, %c0_161, %c0_162], %155 {strides = array<i32>} : memref<1x8x384xf32, #tpu.memory_space<vmem>>, vector<1x8x384xf32>,
    return
  }
  func.func @transform_0(%arg0: i32) -> (i32, i32, i32) {
    %c0_i32 = arith.constant 0 : i32
    %c0_i32_0 = arith.constant 0 : i32
    %c0_i32_1 = arith.constant 0 : i32
    return %arg0, %c0_i32, %c0_i32_0 : i32, i32, i32
  }
  func.func @transform_1(%arg0: i32) -> (i32, i32) {
    %c0_i32 = arith.constant 0 : i32
    %c0_i32_0 = arith.constant 0 : i32
    %c0_i32_1 = arith.constant 0 : i32
    return %c0_i32, %c0_i32_0 : i32, i32
  }
  func.func @transform_2(%arg0: i32) -> (i32, i32) {
    %c0_i32 = arith.constant 0 : i32
    %c0_i32_0 = arith.constant 0 : i32
    %c0_i32_1 = arith.constant 0 : i32
    return %c0_i32, %c0_i32_0 : i32, i32
  }
  func.func @transform_3(%arg0: i32) -> (i32, i32, i32) {
    %c0_i32 = arith.constant 0 : i32
    %c0_i32_0 = arith.constant 0 : i32
    %c0_i32_1 = arith.constant 0 : i32
    return %arg0, %c0_i32, %c0_i32_0 : i32, i32, i32
  }
}

</mosaic_0001>

<llo_original>
// kernel: tpu_custom_call.1
$region0: #{tpu_custom_call.1}
  #allocation0 [shape = 'u32[]', space=smem, size = 0x4, offset = 0x4, fixed_abs, tag = 'smem constant byte address 0x4 - core index']
  #allocation1 [shape = 'u32[144,128]{1,0:T(1,128)}', space=vmem, size = 0x12000, scoped, tag = 'internal scratch']
  #allocation2 [shape = 'f32[392,384]{1,0:T(8,128)}', space=vmem, size = 0x93000, scoped, tag = 'scratch operand']
  %s0 = inlined_call_operand.hbm [shape: f32[2,8,640], index: 0, kind: input, shape index: {}]
  %s1 = inlined_call_operand.hbm [shape: f32[8,392], index: 1, kind: input, shape index: {}]
  %s2 = inlined_call_operand.vmem [shape: f32[8,1], index: 2, kind: input, shape index: {}]
  %s3 = inlined_call_operand.hbm [shape: f32[2,8,384], index: 3, kind: output, shape index: {}]
  %s4 = sld [smem:[#allocation0]]
  $region53: #{tpu_custom_call.1} parent=0
    _
  %s6 = ssub.s32 1, %s4
  %s7 = scalar_select 0, %s6, %s4
  $region1: #{tpu_custom_call.1} parent=0
    #allocation3 [shape = 'u8[40960]{0}', space=vmem, size = 0xa000, scoped, tag = 'input window, operand 0']
    #allocation4 [shape = 's32[2]{0}', space=sflag, size = 0x8, scoped, tag = 'scoped memory for tpu_custom_call.1']
    #allocation5 [shape = 's32[2]{0}', space=sflag, size = 0x8, scoped, tag = 'scoped memory for tpu_custom_call.1']
    #allocation6 [shape = 'u8[16384]{0}', space=vmem, size = 0x4000, scoped, tag = 'input window, operand 1, single buffered']
    #allocation7 [shape = 's32[1]{0}', space=sflag, size = 0x4, scoped, tag = 'scoped memory for tpu_custom_call.1']
    #allocation8 [shape = 'u8[24576]{0}', space=vmem, size = 0x6000, scoped, tag = 'output window, operand 0']
    %8 = vsyncpa [#allocation4], 0
    %s9 = scalar_lea.sflag [#allocation4], 1
    %10 = vsyncpa %s9, 0
    %11 = vsyncpa [#allocation7], 0
    %12 = vsyncpa [#allocation5], 0
    %s13 = scalar_lea.sflag [#allocation5], 1
    %14 = vsyncpa %s13, 0
    loop: start=0, step=1, limit=4
    $region2: #{tpu_custom_call.1} parent=1 // loop_pre_header
      _
    $region3: #{tpu_custom_call.1} parent=1 // loop_header
      %s16 = sphi 0, %s20
      %p17 = scmp.ge.s32.totalorder %s16, 4
      %s26 = sphi 0, %s28
      %s29 = sphi 0, %s26
      %s30 = sphi 0, %s29
      %s46 = sphi 0, %s30
      %s50 = sphi 0, %s50
      %s52 = sphi 0, %s50
      %s53 = sphi 0, %s52
      %s67 = sphi 0, %s53
      %s71 = sphi 0, %s71
      %s73 = sphi 0, %s71
      %s74 = sphi 0, %s73
      %s88 = sphi 0, %s74
      %s94 = sphi 0, %s96
      %s97 = sphi 0, %s94
      %s98 = sphi 0, %s97
      %s114 = sphi 0, %s98
    $region4: #{tpu_custom_call.1} parent=1 // loop_header_branch
      %19 = sbr.rel (%p17) target = $region8
    $region5: #{tpu_custom_call.1} parent=1 // loop_body
      %s21 = ssub.s32 %s16, 1
      %s22 = ssub.s32 %s16, 2
      %s23 = sadd.s32 %s16, 1
      %s24 = ssub.s32 %s16, %s23
      %p25 = scmp.eq.s32.totalorder %s24, 0
      %s27 = sadd.s32 %s26, 1
      %s28 = scalar_select %p25, %s26, %s27
      %p31 = pneg %p25
      %p32 = scmp.eq.s32.totalorder %s16, 1
      %p33 = por %p31, %p32
      %p34 = scmp.ne.s32.totalorder %s26, %s29
      %p35 = scmp.eq.s32.totalorder %s16, 0
      %p36 = por %p34, %p35
      %p37 = scmp.ne.s32.totalorder %s26, %s29
      %p38 = scmp.eq.s32.totalorder %s21, 1
      %p39 = por %p37, %p38
      %p40 = scmp.ne.s32.totalorder %s29, %s30
      %p41 = scmp.eq.s32.totalorder %s21, 0
      %p42 = por %p40, %p41
      %p43 = scmp.ne.s32.totalorder %s29, %s30
      %p44 = scmp.eq.s32.totalorder %s22, 1
      %p45 = por %p43, %p44
      %p47 = scmp.ne.s32.totalorder %s30, %s46
      %p48 = scmp.eq.s32.totalorder %s22, 0
      %p49 = por %p47, %p48
      %s51 = sadd.s32 %s50, 1
      %p54 = scmp.eq.s32.totalorder %s16, 1
      %p55 = scmp.ne.s32.totalorder %s50, %s52
      %p56 = scmp.eq.s32.totalorder %s16, 0
      %p57 = por %p55, %p56
      %p58 = scmp.ne.s32.totalorder %s50, %s52
      %p59 = scmp.eq.s32.totalorder %s21, 1
      %p60 = por %p58, %p59
      %p61 = scmp.ne.s32.totalorder %s52, %s53
      %p62 = scmp.eq.s32.totalorder %s21, 0
      %p63 = por %p61, %p62
      %p64 = scmp.ne.s32.totalorder %s52, %s53
      %p65 = scmp.eq.s32.totalorder %s22, 1
      %p66 = por %p64, %p65
      %p68 = scmp.ne.s32.totalorder %s53, %s67
      %p69 = scmp.eq.s32.totalorder %s22, 0
      %p70 = por %p68, %p69
      %s72 = sadd.s32 %s71, 1
      %p75 = scmp.eq.s32.totalorder %s16, 1
      %p76 = scmp.ne.s32.totalorder %s71, %s73
      %p77 = scmp.eq.s32.totalorder %s16, 0
      %p78 = por %p76, %p77
      %p79 = scmp.ne.s32.totalorder %s71, %s73
      %p80 = scmp.eq.s32.totalorder %s21, 1
      %p81 = por %p79, %p80
      %p82 = scmp.ne.s32.totalorder %s73, %s74
      %p83 = scmp.eq.s32.totalorder %s21, 0
      %p84 = por %p82, %p83
      %p85 = scmp.ne.s32.totalorder %s73, %s74
      %p86 = scmp.eq.s32.totalorder %s22, 1
      %p87 = por %p85, %p86
      %p89 = scmp.ne.s32.totalorder %s74, %s88
      %p90 = scmp.eq.s32.totalorder %s22, 0
      %p91 = por %p89, %p90
      %s92 = ssub.s32 %s16, %s23
      %p93 = scmp.eq.s32.totalorder %s92, 0
      %s95 = sadd.s32 %s94, 1
      %s96 = scalar_select %p93, %s94, %s95
      %p99 = pneg %p93
      %p100 = scmp.eq.s32.totalorder %s16, 1
      %p101 = por %p99, %p100
      %p102 = scmp.ne.s32.totalorder %s94, %s97
      %p103 = scmp.eq.s32.totalorder %s16, 0
      %p104 = por %p102, %p103
      %p105 = scmp.ne.s32.totalorder %s94, %s97
      %p106 = scmp.eq.s32.totalorder %s21, 1
      %p107 = por %p105, %p106
      %p108 = scmp.ne.s32.totalorder %s97, %s98
      %p109 = scmp.eq.s32.totalorder %s21, 0
      %p110 = por %p108, %p109
      %p111 = scmp.ne.s32.totalorder %s97, %s98
      %p112 = scmp.eq.s32.totalorder %s22, 1
      %p113 = por %p111, %p112
      %p115 = scmp.ne.s32.totalorder %s98, %s114
      %p116 = scmp.eq.s32.totalorder %s22, 0
      %p117 = por %p115, %p116
      %p118 = scmp.le.s32.totalorder 1, %s16
      %p119 = scmp.lt.s32.totalorder %s16, 3
      %p120 = pnand %p118, %p119
      %p121 = pneg %p120
      // Predicated region
      $region9: #{tpu_custom_call.1} parent=5 // pred_check
        _
      $region10: #{tpu_custom_call.1} parent=5 // pred_check_branch
        %123 = sbr.rel (%p120) target = $region12
      $region11: #{tpu_custom_call.1} parent=5 // pred_region
        %s124 = ssub.s32 %s16, 1
        // Predicated region
        $region13: #{tpu_custom_call.1} parent=11 // pred_check
          %p125 = pneg %p63
        $region14: #{tpu_custom_call.1} parent=11 // pred_check_branch
          %127 = sbr.rel (%p125) target = $region16
        $region15: #{tpu_custom_call.1} parent=11 // pred_region
          %s129 = ssub.s32 512, 512
          %130 = vsyncadd [#allocation7], %s129
          %s132 = sshll.u32 [#allocation6], 4
          %s133 = int_to_ptr.vmem [resolvable:$true] %s132
          %135 = dma.hbm_to_vmem [thread:$0]  %s1, 512, %s133, [#allocation7]
        $region16: #{tpu_custom_call.1} parent=11 // pred_fallthru
          _
        // Predicated region
        $region17: #{tpu_custom_call.1} parent=11 // pred_check
          %p136 = pneg %p84
        $region18: #{tpu_custom_call.1} parent=11 // pred_check_branch
          %138 = sbr.rel (%p136) target = $region20
        $region19: #{tpu_custom_call.1} parent=11 // pred_region
          _
        $region20: #{tpu_custom_call.1} parent=11 // pred_fallthru
          _
      $region12: #{tpu_custom_call.1} parent=5 // pred_fallthru
        _
      %p139 = scmp.lt.s32.totalorder %s16, 2
      // Predicated region
      $region21: #{tpu_custom_call.1} parent=5 // pred_check
        %p140 = pneg %p139
      $region22: #{tpu_custom_call.1} parent=5 // pred_check_branch
        %142 = sbr.rel (%p140) target = $region24
      $region23: #{tpu_custom_call.1} parent=5 // pred_region
        // Predicated region
        $region25: #{tpu_custom_call.1} parent=23 // pred_check
          %p143 = pneg %p36
        $region26: #{tpu_custom_call.1} parent=23 // pred_check_branch
          %145 = sbr.rel (%p143) target = $region28
        $region27: #{tpu_custom_call.1} parent=23 // pred_region
          %s146 = sand.u32 %s26, 1
          %s147 = scalar_lea.sflag [#allocation4], %s146
          %s148 = sand.u32 %s26, 1
          %s149 = smul.addr %s148, 40
          %s150 = scalar_lea.vmem [#allocation3], %s149
          %s152 = ssub.s32 640, 640
          %153 = vsyncadd %s147, %s152
          %s154 = smul.addr %s16, 5
          %s155 = smul.addr %s154, 128
          %s156 = scalar_lea.hbm %s0, %s155
          %s158 = sshll.u32 %s150, 4
          %s159 = int_to_ptr.vmem [resolvable:$true] %s158
          %161 = dma.hbm_to_vmem [thread:$0]  %s156, 640, %s159, %s147
        $region28: #{tpu_custom_call.1} parent=23 // pred_fallthru
          _
      $region24: #{tpu_custom_call.1} parent=5 // pred_fallthru
        _
      %p162 = scmp.le.s32.totalorder 1, %s16
      %p163 = scmp.lt.s32.totalorder %s16, 3
      %p164 = pnand %p162, %p163
      %p165 = pneg %p164
      // Predicated region
      $region29: #{tpu_custom_call.1} parent=5 // pred_check
        _
      $region30: #{tpu_custom_call.1} parent=5 // pred_check_branch
        %167 = sbr.rel (%p164) target = $region32
      $region31: #{tpu_custom_call.1} parent=5 // pred_region
        %s168 = ssub.s32 %s16, 1
        %s169 = sand.u32 %s29, 1
        %s170 = scalar_lea.sflag [#allocation4], %s169
        %s171 = sand.u32 %s29, 1
        %s172 = smul.addr %s171, 40
        %s173 = scalar_lea.vmem [#allocation3], %s172
        // Predicated region
        $region33: #{tpu_custom_call.1} parent=31 // pred_check
          %p174 = pneg %p42
        $region34: #{tpu_custom_call.1} parent=31 // pred_check_branch
          %176 = sbr.rel (%p174) target = $region36
        $region35: #{tpu_custom_call.1} parent=31 // pred_region
          %177 = dma.done %s170, 640
        $region36: #{tpu_custom_call.1} parent=31 // pred_fallthru
          _
        // Predicated region
        $region37: #{tpu_custom_call.1} parent=31 // pred_check
          %p178 = pneg %p63
        $region38: #{tpu_custom_call.1} parent=31 // pred_check_branch
          %180 = sbr.rel (%p178) target = $region40
        $region39: #{tpu_custom_call.1} parent=31 // pred_region
          %181 = dma.done [#allocation7], 512
        $region40: #{tpu_custom_call.1} parent=31 // pred_fallthru
          _
        %s182 = sand.u32 %s29, 1
        %s183 = scalar_lea.sflag [#allocation4], %s182
        %s184 = sand.u32 %s29, 1
        %s185 = smul.addr %s184, 40
        %s186 = scalar_lea.vmem [#allocation3], %s185
        %p187 = pneg %p42
        %p188 = pneg %p39
        %p189 = pneg %p63
        %p190 = pneg %p60
        %p191 = pneg %p84
        %p192 = pneg %p81
        %p193 = pneg %p110
        %p194 = pneg %p107
        %s195 = sand.u32 %s97, 1
        %s196 = scalar_lea.sflag [#allocation5], %s195
        %s197 = sand.u32 %s97, 1
        %s198 = smul.addr %s197, 24
        %s199 = scalar_lea.vmem [#allocation8], %s198
        %v200 = vld [vmem:[%s173] sm:$0xff]
        %v201 = vld [vmem:[%s173 + $0x8] sm:$0xff]
        %v202 = vld [vmem:[%s173 + $0x10] sm:$0xff]
        %203 = vst [vmem:[#allocation2] sm:$0xff] %v200
        %204 = vst [vmem:[#allocation2 + $0x8] sm:$0xff] %v201
        %205 = vst [vmem:[#allocation2 + $0x10] sm:$0xff] %v202
        %v206 = vld [vmem:[%s173] sm:$0xff]
        %v207 = vld [vmem:[%s173 + $0x8] sm:$0xff]
        %v208 = vld [vmem:[%s173 + $0x10] sm:$0xff]
        %v209 = vld [vmem:[%s173 + $0x18] sm:$0xff]
        %214 = vrot.lane.b32.xlu0 %v206, 127
        %v215 = vpop.permute.xlu0 %214
        %216 = vrot.lane.b32.xlu0 %v207, 127
        %v217 = vpop.permute.xlu0 %216
        %218 = vrot.lane.b32.xlu0 %v208, 127
        %v219 = vpop.permute.xlu0 %218
        %220 = vrot.lane.b32.xlu0 %v209, 127
        %v221 = vpop.permute.xlu0 %220
        %vm222 = vcmask 1039360
        %v223 = vsel %vm222, %v215, %v217
        %v224 = vsel %vm222, %v217, %v219
        %v225 = vsel %vm222, %v219, %v221
        %229 = vst [vmem:[#allocation2 + $0x18] sm:$0xff] %v223
        %230 = vst [vmem:[#allocation2 + $0x20] sm:$0xff] %v224
        %231 = vst [vmem:[#allocation2 + $0x28] sm:$0xff] %v225
        %v232 = vld [vmem:[%s173] sm:$0xff]
        %v233 = vld [vmem:[%s173 + $0x8] sm:$0xff]
        %v234 = vld [vmem:[%s173 + $0x10] sm:$0xff]
        %v235 = vld [vmem:[%s173 + $0x18] sm:$0xff]
        %240 = vrot.lane.b32.xlu0 %v232, 126
        %v241 = vpop.permute.xlu0 %240
        %242 = vrot.lane.b32.xlu0 %v233, 126
        %v243 = vpop.permute.xlu0 %242
        %244 = vrot.lane.b32.xlu0 %v234, 126
        %v245 = vpop.permute.xlu0 %244
        %246 = vrot.lane.b32.xlu0 %v235, 126
        %v247 = vpop.permute.xlu0 %246
        %vm248 = vcmask 1031168
        %v249 = vsel %vm248, %v241, %v243
        %v250 = vsel %vm248, %v243, %v245
        %v251 = vsel %vm248, %v245, %v247
        %255 = vst [vmem:[#allocation2 + $0x30] sm:$0xff] %v249
        %256 = vst [vmem:[#allocation2 + $0x38] sm:$0xff] %v250
        %257 = vst [vmem:[#allocation2 + $0x40] sm:$0xff] %v251
        %v258 = vld [vmem:[%s173] sm:$0xff]
        %v259 = vld [vmem:[%s173 + $0x8] sm:$0xff]
        %v260 = vld [vmem:[%s173 + $0x10] sm:$0xff]
        %v261 = vld [vmem:[%s173 + $0x18] sm:$0xff]
        %266 = vrot.lane.b32.xlu0 %v258, 125
        %v267 = vpop.permute.xlu0 %266
        %268 = vrot.lane.b32.xlu0 %v259, 125
        %v269 = vpop.permute.xlu0 %268
        %270 = vrot.lane.b32.xlu0 %v260, 125
        %v271 = vpop.permute.xlu0 %270
        %272 = vrot.lane.b32.xlu0 %v261, 125
        %v273 = vpop.permute.xlu0 %272
        %vm274 = vcmask 1022976
        %v275 = vsel %vm274, %v267, %v269
        %v276 = vsel %vm274, %v269, %v271
        %v277 = vsel %vm274, %v271, %v273
        %281 = vst [vmem:[#allocation2 + $0x48] sm:$0xff] %v275
        %282 = vst [vmem:[#allocation2 + $0x50] sm:$0xff] %v276
        %283 = vst [vmem:[#allocation2 + $0x58] sm:$0xff] %v277
        %v284 = vld [vmem:[%s173] sm:$0xff]
        %v285 = vld [vmem:[%s173 + $0x8] sm:$0xff]
        %v286 = vld [vmem:[%s173 + $0x10] sm:$0xff]
        %v287 = vld [vmem:[%s173 + $0x18] sm:$0xff]
        %292 = vrot.lane.b32.xlu0 %v284, 124
        %v293 = vpop.permute.xlu0 %292
        %294 = vrot.lane.b32.xlu0 %v285, 124
        %v295 = vpop.permute.xlu0 %294
        %296 = vrot.lane.b32.xlu0 %v286, 124
        %v297 = vpop.permute.xlu0 %296
        %298 = vrot.lane.b32.xlu0 %v287, 124
        %v299 = vpop.permute.xlu0 %298
        %vm300 = vcmask 1014784
        %v301 = vsel %vm300, %v293, %v295
        %v302 = vsel %vm300, %v295, %v297
        %v303 = vsel %vm300, %v297, %v299
        %307 = vst [vmem:[#allocation2 + $0x60] sm:$0xff] %v301
        %308 = vst [vmem:[#allocation2 + $0x68] sm:$0xff] %v302
        %309 = vst [vmem:[#allocation2 + $0x70] sm:$0xff] %v303
        %v310 = vld [vmem:[%s173] sm:$0xff]
        %v311 = vld [vmem:[%s173 + $0x8] sm:$0xff]
        %v312 = vld [vmem:[%s173 + $0x10] sm:$0xff]
        %v313 = vld [vmem:[%s173 + $0x18] sm:$0xff]
        %318 = vrot.lane.b32.xlu0 %v310, 123
        %v319 = vpop.permute.xlu0 %318
        %320 = vrot.lane.b32.xlu0 %v311, 123
        %v321 = vpop.permute.xlu0 %320
        %322 = vrot.lane.b32.xlu0 %v312, 123
        %v323 = vpop.permute.xlu0 %322
        %324 = vrot.lane.b32.xlu0 %v313, 123
        %v325 = vpop.permute.xlu0 %324
        %vm326 = vcmask 1006592
        %v327 = vsel %vm326, %v319, %v321
        %v328 = vsel %vm326, %v321, %v323
        %v329 = vsel %vm326, %v323, %v325
        %333 = vst [vmem:[#allocation2 + $0x78] sm:$0xff] %v327
        %334 = vst [vmem:[#allocation2 + $0x80] sm:$0xff] %v328
        %335 = vst [vmem:[#allocation2 + $0x88] sm:$0xff] %v329
        %v336 = vld [vmem:[%s173] sm:$0xff]
        %v337 = vld [vmem:[%s173 + $0x8] sm:$0xff]
        %v338 = vld [vmem:[%s173 + $0x10] sm:$0xff]
        %v339 = vld [vmem:[%s173 + $0x18] sm:$0xff]
        %344 = vrot.lane.b32.xlu0 %v336, 122
        %v345 = vpop.permute.xlu0 %344
        %346 = vrot.lane.b32.xlu0 %v337, 122
        %v347 = vpop.permute.xlu0 %346
        %348 = vrot.lane.b32.xlu0 %v338, 122
        %v349 = vpop.permute.xlu0 %348
        %350 = vrot.lane.b32.xlu0 %v339, 122
        %v351 = vpop.permute.xlu0 %350
        %vm352 = vcmask 998400
        %v353 = vsel %vm352, %v345, %v347
        %v354 = vsel %vm352, %v347, %v349
        %v355 = vsel %vm352, %v349, %v351
        %359 = vst [vmem:[#allocation2 + $0x90] sm:$0xff] %v353
        %360 = vst [vmem:[#allocation2 + $0x98] sm:$0xff] %v354
        %361 = vst [vmem:[#allocation2 + $0xa0] sm:$0xff] %v355
        %v362 = vld [vmem:[%s173] sm:$0xff]
        %v363 = vld [vmem:[%s173 + $0x8] sm:$0xff]
        %v364 = vld [vmem:[%s173 + $0x10] sm:$0xff]
        %v365 = vld [vmem:[%s173 + $0x18] sm:$0xff]
        %370 = vrot.lane.b32.xlu0 %v362, 106
        %v371 = vpop.permute.xlu0 %370
        %372 = vrot.lane.b32.xlu0 %v363, 106
        %v373 = vpop.permute.xlu0 %372
        %374 = vrot.lane.b32.xlu0 %v364, 106
        %v375 = vpop.permute.xlu0 %374
        %376 = vrot.lane.b32.xlu0 %v365, 106
        %v377 = vpop.permute.xlu0 %376
        %vm378 = vcmask 867328
        %v379 = vsel %vm378, %v371, %v373
        %v380 = vsel %vm378, %v373, %v375
        %v381 = vsel %vm378, %v375, %v377
        %385 = vst [vmem:[#allocation2 + $0xa8] sm:$0xff] %v379
        %386 = vst [vmem:[#allocation2 + $0xb0] sm:$0xff] %v380
        %387 = vst [vmem:[#allocation2 + $0xb8] sm:$0xff] %v381
        %v388 = vld [vmem:[%s173] sm:$0xff]
        %v389 = vld [vmem:[%s173 + $0x8] sm:$0xff]
        %v390 = vld [vmem:[%s173 + $0x10] sm:$0xff]
        %v391 = vld [vmem:[%s173 + $0x18] sm:$0xff]
        %396 = vrot.lane.b32.xlu0 %v388, 105
        %v397 = vpop.permute.xlu0 %396
        %398 = vrot.lane.b32.xlu0 %v389, 105
        %v399 = vpop.permute.xlu0 %398
        %400 = vrot.lane.b32.xlu0 %v390, 105
        %v401 = vpop.permute.xlu0 %400
        %402 = vrot.lane.b32.xlu0 %v391, 105
        %v403 = vpop.permute.xlu0 %402
        %vm404 = vcmask 859136
        %v405 = vsel %vm404, %v397, %v399
        %v406 = vsel %vm404, %v399, %v401
        %v407 = vsel %vm404, %v401, %v403
        %411 = vst [vmem:[#allocation2 + $0xc0] sm:$0xff] %v405
        %412 = vst [vmem:[#allocation2 + $0xc8] sm:$0xff] %v406
        %413 = vst [vmem:[#allocation2 + $0xd0] sm:$0xff] %v407
        %v414 = vld [vmem:[%s173] sm:$0xff]
        %v415 = vld [vmem:[%s173 + $0x8] sm:$0xff]
        %v416 = vld [vmem:[%s173 + $0x10] sm:$0xff]
        %v417 = vld [vmem:[%s173 + $0x18] sm:$0xff]
        %422 = vrot.lane.b32.xlu0 %v414, 104
        %v423 = vpop.permute.xlu0 %422
        %424 = vrot.lane.b32.xlu0 %v415, 104
        %v425 = vpop.permute.xlu0 %424
        %426 = vrot.lane.b32.xlu0 %v416, 104
        %v427 = vpop.permute.xlu0 %426
        %428 = vrot.lane.b32.xlu0 %v417, 104
        %v429 = vpop.permute.xlu0 %428
        %vm430 = vcmask 850944
        %v431 = vsel %vm430, %v423, %v425
        %v432 = vsel %vm430, %v425, %v427
        %v433 = vsel %vm430, %v427, %v429
        %437 = vst [vmem:[#allocation2 + $0xd8] sm:$0xff] %v431
        %438 = vst [vmem:[#allocation2 + $0xe0] sm:$0xff] %v432
        %439 = vst [vmem:[#allocation2 + $0xe8] sm:$0xff] %v433
        %v440 = vld [vmem:[%s173] sm:$0xff]
        %v441 = vld [vmem:[%s173 + $0x8] sm:$0xff]
        %v442 = vld [vmem:[%s173 + $0x10] sm:$0xff]
        %v443 = vld [vmem:[%s173 + $0x18] sm:$0xff]
        %448 = vrot.lane.b32.xlu0 %v440, 103
        %v449 = vpop.permute.xlu0 %448
        %450 = vrot.lane.b32.xlu0 %v441, 103
        %v451 = vpop.permute.xlu0 %450
        %452 = vrot.lane.b32.xlu0 %v442, 103
        %v453 = vpop.permute.xlu0 %452
        %454 = vrot.lane.b32.xlu0 %v443, 103
        %v455 = vpop.permute.xlu0 %454
        %vm456 = vcmask 842752
        %v457 = vsel %vm456, %v449, %v451
        %v458 = vsel %vm456, %v451, %v453
        %v459 = vsel %vm456, %v453, %v455
        %463 = vst [vmem:[#allocation2 + $0xf0] sm:$0xff] %v457
        %464 = vst [vmem:[#allocation2 + $0xf8] sm:$0xff] %v458
        %465 = vst [vmem:[#allocation2 + $0x100] sm:$0xff] %v459
        %v466 = vld [vmem:[%s173] sm:$0xff]
        %v467 = vld [vmem:[%s173 + $0x8] sm:$0xff]
        %v468 = vld [vmem:[%s173 + $0x10] sm:$0xff]
        %v469 = vld [vmem:[%s173 + $0x18] sm:$0xff]
        %474 = vrot.lane.b32.xlu0 %v466, 102
        %v475 = vpop.permute.xlu0 %474
        %476 = vrot.lane.b32.xlu0 %v467, 102
        %v477 = vpop.permute.xlu0 %476
        %478 = vrot.lane.b32.xlu0 %v468, 102
        %v479 = vpop.permute.xlu0 %478
        %480 = vrot.lane.b32.xlu0 %v469, 102
        %v481 = vpop.permute.xlu0 %480
        %vm482 = vcmask 834560
        %v483 = vsel %vm482, %v475, %v477
        %v484 = vsel %vm482, %v477, %v479
        %v485 = vsel %vm482, %v479, %v481
        %489 = vst [vmem:[#allocation2 + $0x108] sm:$0xff] %v483
        %490 = vst [vmem:[#allocation2 + $0x110] sm:$0xff] %v484
        %491 = vst [vmem:[#allocation2 + $0x118] sm:$0xff] %v485
        %v492 = vld [vmem:[%s173] sm:$0xff]
        %v493 = vld [vmem:[%s173 + $0x8] sm:$0xff]
        %v494 = vld [vmem:[%s173 + $0x10] sm:$0xff]
        %v495 = vld [vmem:[%s173 + $0x18] sm:$0xff]
        %500 = vrot.lane.b32.xlu0 %v492, 101
        %v501 = vpop.permute.xlu0 %500
        %502 = vrot.lane.b32.xlu0 %v493, 101
        %v503 = vpop.permute.xlu0 %502
        %504 = vrot.lane.b32.xlu0 %v494, 101
        %v505 = vpop.permute.xlu0 %504
        %506 = vrot.lane.b32.xlu0 %v495, 101
        %v507 = vpop.permute.xlu0 %506
        %vm508 = vcmask 826368
        %v509 = vsel %vm508, %v501, %v503
        %v510 = vsel %vm508, %v503, %v505
        %v511 = vsel %vm508, %v505, %v507
        %515 = vst [vmem:[#allocation2 + $0x120] sm:$0xff] %v509
        %516 = vst [vmem:[#allocation2 + $0x128] sm:$0xff] %v510
        %517 = vst [vmem:[#allocation2 + $0x130] sm:$0xff] %v511
        %v518 = vld [vmem:[%s173] sm:$0xff]
        %v519 = vld [vmem:[%s173 + $0x8] sm:$0xff]
        %v520 = vld [vmem:[%s173 + $0x10] sm:$0xff]
        %v521 = vld [vmem:[%s173 + $0x18] sm:$0xff]
        %526 = vrot.lane.b32.xlu0 %v518, 100
        %v527 = vpop.permute.xlu0 %526
        %528 = vrot.lane.b32.xlu0 %v519, 100
        %v529 = vpop.permute.xlu0 %528
        %530 = vrot.lane.b32.xlu0 %v520, 100
        %v531 = vpop.permute.xlu0 %530
        %532 = vrot.lane.b32.xlu0 %v521, 100
        %v533 = vpop.permute.xlu0 %532
        %vm534 = vcmask 818176
        %v535 = vsel %vm534, %v527, %v529
        %v536 = vsel %vm534, %v529, %v531
        %v537 = vsel %vm534, %v531, %v533
        %541 = vst [vmem:[#allocation2 + $0x138] sm:$0xff] %v535
        %542 = vst [vmem:[#allocation2 + $0x140] sm:$0xff] %v536
        %543 = vst [vmem:[#allocation2 + $0x148] sm:$0xff] %v537
        %v544 = vld [vmem:[%s173] sm:$0xff]
        %v545 = vld [vmem:[%s173 + $0x8] sm:$0xff]
        %v546 = vld [vmem:[%s173 + $0x10] sm:$0xff]
        %v547 = vld [vmem:[%s173 + $0x18] sm:$0xff]
        %552 = vrot.lane.b32.xlu0 %v544, 84
        %v553 = vpop.permute.xlu0 %552
        %554 = vrot.lane.b32.xlu0 %v545, 84
        %v555 = vpop.permute.xlu0 %554
        %556 = vrot.lane.b32.xlu0 %v546, 84
        %v557 = vpop.permute.xlu0 %556
        %558 = vrot.lane.b32.xlu0 %v547, 84
        %v559 = vpop.permute.xlu0 %558
        %vm560 = vcmask 687104
        %v561 = vsel %vm560, %v553, %v555
        %v562 = vsel %vm560, %v555, %v557
        %v563 = vsel %vm560, %v557, %v559
        %567 = vst [vmem:[#allocation2 + $0x150] sm:$0xff] %v561
        %568 = vst [vmem:[#allocation2 + $0x158] sm:$0xff] %v562
        %569 = vst [vmem:[#allocation2 + $0x160] sm:$0xff] %v563
        %v570 = vld [vmem:[%s173] sm:$0xff]
        %v571 = vld [vmem:[%s173 + $0x8] sm:$0xff]
        %v572 = vld [vmem:[%s173 + $0x10] sm:$0xff]
        %v573 = vld [vmem:[%s173 + $0x18] sm:$0xff]
        %578 = vrot.lane.b32.xlu0 %v570, 83
        %v579 = vpop.permute.xlu0 %578
        %580 = vrot.lane.b32.xlu0 %v571, 83
        %v581 = vpop.permute.xlu0 %580
        %582 = vrot.lane.b32.xlu0 %v572, 83
        %v583 = vpop.permute.xlu0 %582
        %584 = vrot.lane.b32.xlu0 %v573, 83
        %v585 = vpop.permute.xlu0 %584
        %vm586 = vcmask 678912
        %v587 = vsel %vm586, %v579, %v581
        %v588 = vsel %vm586, %v581, %v583
        %v589 = vsel %vm586, %v583, %v585
        %593 = vst [vmem:[#allocation2 + $0x168] sm:$0xff] %v587
        %594 = vst [vmem:[#allocation2 + $0x170] sm:$0xff] %v588
        %595 = vst [vmem:[#allocation2 + $0x178] sm:$0xff] %v589
        %v596 = vld [vmem:[%s173] sm:$0xff]
        %v597 = vld [vmem:[%s173 + $0x8] sm:$0xff]
        %v598 = vld [vmem:[%s173 + $0x10] sm:$0xff]
        %v599 = vld [vmem:[%s173 + $0x18] sm:$0xff]
        %604 = vrot.lane.b32.xlu0 %v596, 82
        %v605 = vpop.permute.xlu0 %604
        %606 = vrot.lane.b32.xlu0 %v597, 82
        %v607 = vpop.permute.xlu0 %606
        %608 = vrot.lane.b32.xlu0 %v598, 82
        %v609 = vpop.permute.xlu0 %608
        %610 = vrot.lane.b32.xlu0 %v599, 82
        %v611 = vpop.permute.xlu0 %610
        %vm612 = vcmask 670720
        %v613 = vsel %vm612, %v605, %v607
        %v614 = vsel %vm612, %v607, %v609
        %v615 = vsel %vm612, %v609, %v611
        %619 = vst [vmem:[#allocation2 + $0x180] sm:$0xff] %v613
        %620 = vst [vmem:[#allocation2 + $0x188] sm:$0xff] %v614
        %621 = vst [vmem:[#allocation2 + $0x190] sm:$0xff] %v615
        %v622 = vld [vmem:[%s173] sm:$0xff]
        %v623 = vld [vmem:[%s173 + $0x8] sm:$0xff]
        %v624 = vld [vmem:[%s173 + $0x10] sm:$0xff]
        %v625 = vld [vmem:[%s173 + $0x18] sm:$0xff]
        %630 = vrot.lane.b32.xlu0 %v622, 81
        %v631 = vpop.permute.xlu0 %630
        %632 = vrot.lane.b32.xlu0 %v623, 81
        %v633 = vpop.permute.xlu0 %632
        %634 = vrot.lane.b32.xlu0 %v624, 81
        %v635 = vpop.permute.xlu0 %634
        %636 = vrot.lane.b32.xlu0 %v625, 81
        %v637 = vpop.permute.xlu0 %636
        %vm638 = vcmask 662528
        %v639 = vsel %vm638, %v631, %v633
        %v640 = vsel %vm638, %v633, %v635
        %v641 = vsel %vm638, %v635, %v637
        %645 = vst [vmem:[#allocation2 + $0x198] sm:$0xff] %v639
        %646 = vst [vmem:[#allocation2 + $0x1a0] sm:$0xff] %v640
        %647 = vst [vmem:[#allocation2 + $0x1a8] sm:$0xff] %v641
        %v648 = vld [vmem:[%s173] sm:$0xff]
        %v649 = vld [vmem:[%s173 + $0x8] sm:$0xff]
        %v650 = vld [vmem:[%s173 + $0x10] sm:$0xff]
        %v651 = vld [vmem:[%s173 + $0x18] sm:$0xff]
        %656 = vrot.lane.b32.xlu0 %v648, 80
        %v657 = vpop.permute.xlu0 %656
        %658 = vrot.lane.b32.xlu0 %v649, 80
        %v659 = vpop.permute.xlu0 %658
        %660 = vrot.lane.b32.xlu0 %v650, 80
        %v661 = vpop.permute.xlu0 %660
        %662 = vrot.lane.b32.xlu0 %v651, 80
        %v663 = vpop.permute.xlu0 %662
        %vm664 = vcmask 654336
        %v665 = vsel %vm664, %v657, %v659
        %v666 = vsel %vm664, %v659, %v661
        %v667 = vsel %vm664, %v661, %v663
        %671 = vst [vmem:[#allocation2 + $0x1b0] sm:$0xff] %v665
        %672 = vst [vmem:[#allocation2 + $0x1b8] sm:$0xff] %v666
        %673 = vst [vmem:[#allocation2 + $0x1c0] sm:$0xff] %v667
        %v674 = vld [vmem:[%s173] sm:$0xff]
        %v675 = vld [vmem:[%s173 + $0x8] sm:$0xff]
        %v676 = vld [vmem:[%s173 + $0x10] sm:$0xff]
        %v677 = vld [vmem:[%s173 + $0x18] sm:$0xff]
        %682 = vrot.lane.b32.xlu0 %v674, 79
        %v683 = vpop.permute.xlu0 %682
        %684 = vrot.lane.b32.xlu0 %v675, 79
        %v685 = vpop.permute.xlu0 %684
        %686 = vrot.lane.b32.xlu0 %v676, 79
        %v687 = vpop.permute.xlu0 %686
        %688 = vrot.lane.b32.xlu0 %v677, 79
        %v689 = vpop.permute.xlu0 %688
        %vm690 = vcmask 646144
        %v691 = vsel %vm690, %v683, %v685
        %v692 = vsel %vm690, %v685, %v687
        %v693 = vsel %vm690, %v687, %v689
        %697 = vst [vmem:[#allocation2 + $0x1c8] sm:$0xff] %v691
        %698 = vst [vmem:[#allocation2 + $0x1d0] sm:$0xff] %v692
        %699 = vst [vmem:[#allocation2 + $0x1d8] sm:$0xff] %v693
        %v700 = vld [vmem:[%s173] sm:$0xff]
        %v701 = vld [vmem:[%s173 + $0x8] sm:$0xff]
        %v702 = vld [vmem:[%s173 + $0x10] sm:$0xff]
        %v703 = vld [vmem:[%s173 + $0x18] sm:$0xff]
        %708 = vrot.lane.b32.xlu0 %v700, 78
        %v709 = vpop.permute.xlu0 %708
        %710 = vrot.lane.b32.xlu0 %v701, 78
        %v711 = vpop.permute.xlu0 %710
        %712 = vrot.lane.b32.xlu0 %v702, 78
        %v713 = vpop.permute.xlu0 %712
        %714 = vrot.lane.b32.xlu0 %v703, 78
        %v715 = vpop.permute.xlu0 %714
        %vm716 = vcmask 637952
        %v717 = vsel %vm716, %v709, %v711
        %v718 = vsel %vm716, %v711, %v713
        %v719 = vsel %vm716, %v713, %v715
        %723 = vst [vmem:[#allocation2 + $0x1e0] sm:$0xff] %v717
        %724 = vst [vmem:[#allocation2 + $0x1e8] sm:$0xff] %v718
        %725 = vst [vmem:[#allocation2 + $0x1f0] sm:$0xff] %v719
        %v726 = vld [vmem:[%s173] sm:$0xff]
        %v727 = vld [vmem:[%s173 + $0x8] sm:$0xff]
        %v728 = vld [vmem:[%s173 + $0x10] sm:$0xff]
        %v729 = vld [vmem:[%s173 + $0x18] sm:$0xff]
        %734 = vrot.lane.b32.xlu0 %v726, 62
        %v735 = vpop.permute.xlu0 %734
        %736 = vrot.lane.b32.xlu0 %v727, 62
        %v737 = vpop.permute.xlu0 %736
        %738 = vrot.lane.b32.xlu0 %v728, 62
        %v739 = vpop.permute.xlu0 %738
        %740 = vrot.lane.b32.xlu0 %v729, 62
        %v741 = vpop.permute.xlu0 %740
        %vm742 = vcmask 506880
        %v743 = vsel %vm742, %v735, %v737
        %v744 = vsel %vm742, %v737, %v739
        %v745 = vsel %vm742, %v739, %v741
        %749 = vst [vmem:[#allocation2 + $0x1f8] sm:$0xff] %v743
        %750 = vst [vmem:[#allocation2 + $0x200] sm:$0xff] %v744
        %751 = vst [vmem:[#allocation2 + $0x208] sm:$0xff] %v745
        %v752 = vld [vmem:[%s173] sm:$0xff]
        %v753 = vld [vmem:[%s173 + $0x8] sm:$0xff]
        %v754 = vld [vmem:[%s173 + $0x10] sm:$0xff]
        %v755 = vld [vmem:[%s173 + $0x18] sm:$0xff]
        %760 = vrot.lane.b32.xlu0 %v752, 61
        %v761 = vpop.permute.xlu0 %760
        %762 = vrot.lane.b32.xlu0 %v753, 61
        %v763 = vpop.permute.xlu0 %762
        %764 = vrot.lane.b32.xlu0 %v754, 61
        %v765 = vpop.permute.xlu0 %764
        %766 = vrot.lane.b32.xlu0 %v755, 61
        %v767 = vpop.permute.xlu0 %766
        %vm768 = vcmask 498688
        %v769 = vsel %vm768, %v761, %v763
        %v770 = vsel %vm768, %v763, %v765
        %v771 = vsel %vm768, %v765, %v767
        %775 = vst [vmem:[#allocation2 + $0x210] sm:$0xff] %v769
        %776 = vst [vmem:[#allocation2 + $0x218] sm:$0xff] %v770
        %777 = vst [vmem:[#allocation2 + $0x220] sm:$0xff] %v771
        %v778 = vld [vmem:[%s173] sm:$0xff]
        %v779 = vld [vmem:[%s173 + $0x8] sm:$0xff]
        %v780 = vld [vmem:[%s173 + $0x10] sm:$0xff]
        %v781 = vld [vmem:[%s173 + $0x18] sm:$0xff]
        %786 = vrot.lane.b32.xlu0 %v778, 60
        %v787 = vpop.permute.xlu0 %786
        %788 = vrot.lane.b32.xlu0 %v779, 60
        %v789 = vpop.permute.xlu0 %788
        %790 = vrot.lane.b32.xlu0 %v780, 60
        %v791 = vpop.permute.xlu0 %790
        %792 = vrot.lane.b32.xlu0 %v781, 60
        %v793 = vpop.permute.xlu0 %792
        %vm794 = vcmask 490496
        %v795 = vsel %vm794, %v787, %v789
        %v796 = vsel %vm794, %v789, %v791
        %v797 = vsel %vm794, %v791, %v793
        %801 = vst [vmem:[#allocation2 + $0x228] sm:$0xff] %v795
        %802 = vst [vmem:[#allocation2 + $0x230] sm:$0xff] %v796
        %803 = vst [vmem:[#allocation2 + $0x238] sm:$0xff] %v797
        %v804 = vld [vmem:[%s173] sm:$0xff]
        %v805 = vld [vmem:[%s173 + $0x8] sm:$0xff]
        %v806 = vld [vmem:[%s173 + $0x10] sm:$0xff]
        %v807 = vld [vmem:[%s173 + $0x18] sm:$0xff]
        %812 = vrot.lane.b32.xlu0 %v804, 59
        %v813 = vpop.permute.xlu0 %812
        %814 = vrot.lane.b32.xlu0 %v805, 59
        %v815 = vpop.permute.xlu0 %814
        %816 = vrot.lane.b32.xlu0 %v806, 59
        %v817 = vpop.permute.xlu0 %816
        %818 = vrot.lane.b32.xlu0 %v807, 59
        %v819 = vpop.permute.xlu0 %818
        %vm820 = vcmask 482304
        %v821 = vsel %vm820, %v813, %v815
        %v822 = vsel %vm820, %v815, %v817
        %v823 = vsel %vm820, %v817, %v819
        %827 = vst [vmem:[#allocation2 + $0x240] sm:$0xff] %v821
        %828 = vst [vmem:[#allocation2 + $0x248] sm:$0xff] %v822
        %829 = vst [vmem:[#allocation2 + $0x250] sm:$0xff] %v823
        %v830 = vld [vmem:[%s173] sm:$0xff]
        %v831 = vld [vmem:[%s173 + $0x8] sm:$0xff]
        %v832 = vld [vmem:[%s173 + $0x10] sm:$0xff]
        %v833 = vld [vmem:[%s173 + $0x18] sm:$0xff]
        %838 = vrot.lane.b32.xlu0 %v830, 58
        %v839 = vpop.permute.xlu0 %838
        %840 = vrot.lane.b32.xlu0 %v831, 58
        %v841 = vpop.permute.xlu0 %840
        %842 = vrot.lane.b32.xlu0 %v832, 58
        %v843 = vpop.permute.xlu0 %842
        %844 = vrot.lane.b32.xlu0 %v833, 58
        %v845 = vpop.permute.xlu0 %844
        %vm846 = vcmask 474112
        %v847 = vsel %vm846, %v839, %v841
        %v848 = vsel %vm846, %v841, %v843
        %v849 = vsel %vm846, %v843, %v845
        %853 = vst [vmem:[#allocation2 + $0x258] sm:$0xff] %v847
        %854 = vst [vmem:[#allocation2 + $0x260] sm:$0xff] %v848
        %855 = vst [vmem:[#allocation2 + $0x268] sm:$0xff] %v849
        %v856 = vld [vmem:[%s173] sm:$0xff]
        %v857 = vld [vmem:[%s173 + $0x8] sm:$0xff]
        %v858 = vld [vmem:[%s173 + $0x10] sm:$0xff]
        %v859 = vld [vmem:[%s173 + $0x18] sm:$0xff]
        %864 = vrot.lane.b32.xlu0 %v856, 57
        %v865 = vpop.permute.xlu0 %864
        %866 = vrot.lane.b32.xlu0 %v857, 57
        %v867 = vpop.permute.xlu0 %866
        %868 = vrot.lane.b32.xlu0 %v858, 57
        %v869 = vpop.permute.xlu0 %868
        %870 = vrot.lane.b32.xlu0 %v859, 57
        %v871 = vpop.permute.xlu0 %870
        %vm872 = vcmask 465920
        %v873 = vsel %vm872, %v865, %v867
        %v874 = vsel %vm872, %v867, %v869
        %v875 = vsel %vm872, %v869, %v871
        %879 = vst [vmem:[#allocation2 + $0x270] sm:$0xff] %v873
        %880 = vst [vmem:[#allocation2 + $0x278] sm:$0xff] %v874
        %881 = vst [vmem:[#allocation2 + $0x280] sm:$0xff] %v875
        %v882 = vld [vmem:[%s173] sm:$0xff]
        %v883 = vld [vmem:[%s173 + $0x8] sm:$0xff]
        %v884 = vld [vmem:[%s173 + $0x10] sm:$0xff]
        %v885 = vld [vmem:[%s173 + $0x18] sm:$0xff]
        %890 = vrot.lane.b32.xlu0 %v882, 56
        %v891 = vpop.permute.xlu0 %890
        %892 = vrot.lane.b32.xlu0 %v883, 56
        %v893 = vpop.permute.xlu0 %892
        %894 = vrot.lane.b32.xlu0 %v884, 56
        %v895 = vpop.permute.xlu0 %894
        %896 = vrot.lane.b32.xlu0 %v885, 56
        %v897 = vpop.permute.xlu0 %896
        %vm898 = vcmask 457728
        %v899 = vsel %vm898, %v891, %v893
        %v900 = vsel %vm898, %v893, %v895
        %v901 = vsel %vm898, %v895, %v897
        %905 = vst [vmem:[#allocation2 + $0x288] sm:$0xff] %v899
        %906 = vst [vmem:[#allocation2 + $0x290] sm:$0xff] %v900
        %907 = vst [vmem:[#allocation2 + $0x298] sm:$0xff] %v901
        %v908 = vld [vmem:[%s173] sm:$0xff]
        %v909 = vld [vmem:[%s173 + $0x8] sm:$0xff]
        %v910 = vld [vmem:[%s173 + $0x10] sm:$0xff]
        %v911 = vld [vmem:[%s173 + $0x18] sm:$0xff]
        %916 = vrot.lane.b32.xlu0 %v908, 40
        %v917 = vpop.permute.xlu0 %916
        %918 = vrot.lane.b32.xlu0 %v909, 40
        %v919 = vpop.permute.xlu0 %918
        %920 = vrot.lane.b32.xlu0 %v910, 40
        %v921 = vpop.permute.xlu0 %920
        %922 = vrot.lane.b32.xlu0 %v911, 40
        %v923 = vpop.permute.xlu0 %922
        %vm924 = vcmask 326656
        %v925 = vsel %vm924, %v917, %v919
        %v926 = vsel %vm924, %v919, %v921
        %v927 = vsel %vm924, %v921, %v923
        %931 = vst [vmem:[#allocation2 + $0x2a0] sm:$0xff] %v925
        %932 = vst [vmem:[#allocation2 + $0x2a8] sm:$0xff] %v926
        %933 = vst [vmem:[#allocation2 + $0x2b0] sm:$0xff] %v927
        %v934 = vld [vmem:[%s173] sm:$0xff]
        %v935 = vld [vmem:[%s173 + $0x8] sm:$0xff]
        %v936 = vld [vmem:[%s173 + $0x10] sm:$0xff]
        %v937 = vld [vmem:[%s173 + $0x18] sm:$0xff]
        %942 = vrot.lane.b32.xlu0 %v934, 39
        %v943 = vpop.permute.xlu0 %942
        %944 = vrot.lane.b32.xlu0 %v935, 39
        %v945 = vpop.permute.xlu0 %944
        %946 = vrot.lane.b32.xlu0 %v936, 39
        %v947 = vpop.permute.xlu0 %946
        %948 = vrot.lane.b32.xlu0 %v937, 39
        %v949 = vpop.permute.xlu0 %948
        %vm950 = vcmask 318464
        %v951 = vsel %vm950, %v943, %v945
        %v952 = vsel %vm950, %v945, %v947
        %v953 = vsel %vm950, %v947, %v949
        %957 = vst [vmem:[#allocation2 + $0x2b8] sm:$0xff] %v951
        %958 = vst [vmem:[#allocation2 + $0x2c0] sm:$0xff] %v952
        %959 = vst [vmem:[#allocation2 + $0x2c8] sm:$0xff] %v953
        %v960 = vld [vmem:[%s173] sm:$0xff]
        %v961 = vld [vmem:[%s173 + $0x8] sm:$0xff]
        %v962 = vld [vmem:[%s173 + $0x10] sm:$0xff]
        %v963 = vld [vmem:[%s173 + $0x18] sm:$0xff]
        %968 = vrot.lane.b32.xlu0 %v960, 38
        %v969 = vpop.permute.xlu0 %968
        %970 = vrot.lane.b32.xlu0 %v961, 38
        %v971 = vpop.permute.xlu0 %970
        %972 = vrot.lane.b32.xlu0 %v962, 38
        %v973 = vpop.permute.xlu0 %972
        %974 = vrot.lane.b32.xlu0 %v963, 38
        %v975 = vpop.permute.xlu0 %974
        %vm976 = vcmask 310272
        %v977 = vsel %vm976, %v969, %v971
        %v978 = vsel %vm976, %v971, %v973
        %v979 = vsel %vm976, %v973, %v975
        %983 = vst [vmem:[#allocation2 + $0x2d0] sm:$0xff] %v977
        %984 = vst [vmem:[#allocation2 + $0x2d8] sm:$0xff] %v978
        %985 = vst [vmem:[#allocation2 + $0x2e0] sm:$0xff] %v979
        %v986 = vld [vmem:[%s173] sm:$0xff]
        %v987 = vld [vmem:[%s173 + $0x8] sm:$0xff]
        %v988 = vld [vmem:[%s173 + $0x10] sm:$0xff]
        %v989 = vld [vmem:[%s173 + $0x18] sm:$0xff]
        %994 = vrot.lane.b32.xlu0 %v986, 37
        %v995 = vpop.permute.xlu0 %994
        %996 = vrot.lane.b32.xlu0 %v987, 37
        %v997 = vpop.permute.xlu0 %996
        %998 = vrot.lane.b32.xlu0 %v988, 37
        %v999 = vpop.permute.xlu0 %998
        %1000 = vrot.lane.b32.xlu0 %v989, 37
        %v1001 = vpop.permute.xlu0 %1000
        %vm1002 = vcmask 302080
        %v1003 = vsel %vm1002, %v995, %v997
        %v1004 = vsel %vm1002, %v997, %v999
        %v1005 = vsel %vm1002, %v999, %v1001
        %1009 = vst [vmem:[#allocation2 + $0x2e8] sm:$0xff] %v1003
        %1010 = vst [vmem:[#allocation2 + $0x2f0] sm:$0xff] %v1004
        %1011 = vst [vmem:[#allocation2 + $0x2f8] sm:$0xff] %v1005
        %v1012 = vld [vmem:[%s173] sm:$0xff]
        %v1013 = vld [vmem:[%s173 + $0x8] sm:$0xff]
        %v1014 = vld [vmem:[%s173 + $0x10] sm:$0xff]
        %v1015 = vld [vmem:[%s173 + $0x18] sm:$0xff]
        %1020 = vrot.lane.b32.xlu0 %v1012, 36
        %v1021 = vpop.permute.xlu0 %1020
        %1022 = vrot.lane.b32.xlu0 %v1013, 36
        %v1023 = vpop.permute.xlu0 %1022
        %1024 = vrot.lane.b32.xlu0 %v1014, 36
        %v1025 = vpop.permute.xlu0 %1024
        %1026 = vrot.lane.b32.xlu0 %v1015, 36
        %v1027 = vpop.permute.xlu0 %1026
        %vm1028 = vcmask 293888
        %v1029 = vsel %vm1028, %v1021, %v1023
        %v1030 = vsel %vm1028, %v1023, %v1025
        %v1031 = vsel %vm1028, %v1025, %v1027
        %1035 = vst [vmem:[#allocation2 + $0x300] sm:$0xff] %v1029
        %1036 = vst [vmem:[#allocation2 + $0x308] sm:$0xff] %v1030
        %1037 = vst [vmem:[#allocation2 + $0x310] sm:$0xff] %v1031
        %v1038 = vld [vmem:[%s173] sm:$0xff]
        %v1039 = vld [vmem:[%s173 + $0x8] sm:$0xff]
        %v1040 = vld [vmem:[%s173 + $0x10] sm:$0xff]
        %v1041 = vld [vmem:[%s173 + $0x18] sm:$0xff]
        %1046 = vrot.lane.b32.xlu0 %v1038, 35
        %v1047 = vpop.permute.xlu0 %1046
        %1048 = vrot.lane.b32.xlu0 %v1039, 35
        %v1049 = vpop.permute.xlu0 %1048
        %1050 = vrot.lane.b32.xlu0 %v1040, 35
        %v1051 = vpop.permute.xlu0 %1050
        %1052 = vrot.lane.b32.xlu0 %v1041, 35
        %v1053 = vpop.permute.xlu0 %1052
        %vm1054 = vcmask 285696
        %v1055 = vsel %vm1054, %v1047, %v1049
        %v1056 = vsel %vm1054, %v1049, %v1051
        %v1057 = vsel %vm1054, %v1051, %v1053
        %1061 = vst [vmem:[#allocation2 + $0x318] sm:$0xff] %v1055
        %1062 = vst [vmem:[#allocation2 + $0x320] sm:$0xff] %v1056
        %1063 = vst [vmem:[#allocation2 + $0x328] sm:$0xff] %v1057
        %v1064 = vld [vmem:[%s173] sm:$0xff]
        %v1065 = vld [vmem:[%s173 + $0x8] sm:$0xff]
        %v1066 = vld [vmem:[%s173 + $0x10] sm:$0xff]
        %v1067 = vld [vmem:[%s173 + $0x18] sm:$0xff]
        %1072 = vrot.lane.b32.xlu0 %v1064, 34
        %v1073 = vpop.permute.xlu0 %1072
        %1074 = vrot.lane.b32.xlu0 %v1065, 34
        %v1075 = vpop.permute.xlu0 %1074
        %1076 = vrot.lane.b32.xlu0 %v1066, 34
        %v1077 = vpop.permute.xlu0 %1076
        %1078 = vrot.lane.b32.xlu0 %v1067, 34
        %v1079 = vpop.permute.xlu0 %1078
        %vm1080 = vcmask 277504
        %v1081 = vsel %vm1080, %v1073, %v1075
        %v1082 = vsel %vm1080, %v1075, %v1077
        %v1083 = vsel %vm1080, %v1077, %v1079
        %1087 = vst [vmem:[#allocation2 + $0x330] sm:$0xff] %v1081
        %1088 = vst [vmem:[#allocation2 + $0x338] sm:$0xff] %v1082
        %1089 = vst [vmem:[#allocation2 + $0x340] sm:$0xff] %v1083
        %v1090 = vld [vmem:[%s173] sm:$0xff]
        %v1091 = vld [vmem:[%s173 + $0x8] sm:$0xff]
        %v1092 = vld [vmem:[%s173 + $0x10] sm:$0xff]
        %v1093 = vld [vmem:[%s173 + $0x18] sm:$0xff]
        %1098 = vrot.lane.b32.xlu0 %v1090, 18
        %v1099 = vpop.permute.xlu0 %1098
        %1100 = vrot.lane.b32.xlu0 %v1091, 18
        %v1101 = vpop.permute.xlu0 %1100
        %1102 = vrot.lane.b32.xlu0 %v1092, 18
        %v1103 = vpop.permute.xlu0 %1102
        %1104 = vrot.lane.b32.xlu0 %v1093, 18
        %v1105 = vpop.permute.xlu0 %1104
        %vm1106 = vcmask 146432
        %v1107 = vsel %vm1106, %v1099, %v1101
        %v1108 = vsel %vm1106, %v1101, %v1103
        %v1109 = vsel %vm1106, %v1103, %v1105
        %1113 = vst [vmem:[#allocation2 + $0x348] sm:$0xff] %v1107
        %1114 = vst [vmem:[#allocation2 + $0x350] sm:$0xff] %v1108
        %1115 = vst [vmem:[#allocation2 + $0x358] sm:$0xff] %v1109
        %v1116 = vld [vmem:[%s173] sm:$0xff]
        %v1117 = vld [vmem:[%s173 + $0x8] sm:$0xff]
        %v1118 = vld [vmem:[%s173 + $0x10] sm:$0xff]
        %v1119 = vld [vmem:[%s173 + $0x18] sm:$0xff]
        %1124 = vrot.lane.b32.xlu0 %v1116, 17
        %v1125 = vpop.permute.xlu0 %1124
        %1126 = vrot.lane.b32.xlu0 %v1117, 17
        %v1127 = vpop.permute.xlu0 %1126
        %1128 = vrot.lane.b32.xlu0 %v1118, 17
        %v1129 = vpop.permute.xlu0 %1128
        %1130 = vrot.lane.b32.xlu0 %v1119, 17
        %v1131 = vpop.permute.xlu0 %1130
        %vm1132 = vcmask 138240
        %v1133 = vsel %vm1132, %v1125, %v1127
        %v1134 = vsel %vm1132, %v1127, %v1129
        %v1135 = vsel %vm1132, %v1129, %v1131
        %1139 = vst [vmem:[#allocation2 + $0x360] sm:$0xff] %v1133
        %1140 = vst [vmem:[#allocation2 + $0x368] sm:$0xff] %v1134
        %1141 = vst [vmem:[#allocation2 + $0x370] sm:$0xff] %v1135
        %v1142 = vld [vmem:[%s173] sm:$0xff]
        %v1143 = vld [vmem:[%s173 + $0x8] sm:$0xff]
        %v1144 = vld [vmem:[%s173 + $0x10] sm:$0xff]
        %v1145 = vld [vmem:[%s173 + $0x18] sm:$0xff]
        %1150 = vrot.lane.b32.xlu0 %v1142, 16
        %v1151 = vpop.permute.xlu0 %1150
        %1152 = vrot.lane.b32.xlu0 %v1143, 16
        %v1153 = vpop.permute.xlu0 %1152
        %1154 = vrot.lane.b32.xlu0 %v1144, 16
        %v1155 = vpop.permute.xlu0 %1154
        %1156 = vrot.lane.b32.xlu0 %v1145, 16
        %v1157 = vpop.permute.xlu0 %1156
        %vm1158 = vcmask 130048
        %v1159 = vsel %vm1158, %v1151, %v1153
        %v1160 = vsel %vm1158, %v1153, %v1155
        %v1161 = vsel %vm1158, %v1155, %v1157
        %1165 = vst [vmem:[#allocation2 + $0x378] sm:$0xff] %v1159
        %1166 = vst [vmem:[#allocation2 + $0x380] sm:$0xff] %v1160
        %1167 = vst [vmem:[#allocation2 + $0x388] sm:$0xff] %v1161
        %v1168 = vld [vmem:[%s173] sm:$0xff]
        %v1169 = vld [vmem:[%s173 + $0x8] sm:$0xff]
        %v1170 = vld [vmem:[%s173 + $0x10] sm:$0xff]
        %v1171 = vld [vmem:[%s173 + $0x18] sm:$0xff]
        %1176 = vrot.lane.b32.xlu0 %v1168, 15
        %v1177 = vpop.permute.xlu0 %1176
        %1178 = vrot.lane.b32.xlu0 %v1169, 15
        %v1179 = vpop.permute.xlu0 %1178
        %1180 = vrot.lane.b32.xlu0 %v1170, 15
        %v1181 = vpop.permute.xlu0 %1180
        %1182 = vrot.lane.b32.xlu0 %v1171, 15
        %v1183 = vpop.permute.xlu0 %1182
        %vm1184 = vcmask 121856
        %v1185 = vsel %vm1184, %v1177, %v1179
        %v1186 = vsel %vm1184, %v1179, %v1181
        %v1187 = vsel %vm1184, %v1181, %v1183
        %1191 = vst [vmem:[#allocation2 + $0x390] sm:$0xff] %v1185
        %1192 = vst [vmem:[#allocation2 + $0x398] sm:$0xff] %v1186
        %1193 = vst [vmem:[#allocation2 + $0x3a0] sm:$0xff] %v1187
        %v1194 = vld [vmem:[%s173] sm:$0xff]
        %v1195 = vld [vmem:[%s173 + $0x8] sm:$0xff]
        %v1196 = vld [vmem:[%s173 + $0x10] sm:$0xff]
        %v1197 = vld [vmem:[%s173 + $0x18] sm:$0xff]
        %1202 = vrot.lane.b32.xlu0 %v1194, 14
        %v1203 = vpop.permute.xlu0 %1202
        %1204 = vrot.lane.b32.xlu0 %v1195, 14
        %v1205 = vpop.permute.xlu0 %1204
        %1206 = vrot.lane.b32.xlu0 %v1196, 14
        %v1207 = vpop.permute.xlu0 %1206
        %1208 = vrot.lane.b32.xlu0 %v1197, 14
        %v1209 = vpop.permute.xlu0 %1208
        %vm1210 = vcmask 113664
        %v1211 = vsel %vm1210, %v1203, %v1205
        %v1212 = vsel %vm1210, %v1205, %v1207
        %v1213 = vsel %vm1210, %v1207, %v1209
        %1217 = vst [vmem:[#allocation2 + $0x3a8] sm:$0xff] %v1211
        %1218 = vst [vmem:[#allocation2 + $0x3b0] sm:$0xff] %v1212
        %1219 = vst [vmem:[#allocation2 + $0x3b8] sm:$0xff] %v1213
        %v1220 = vld [vmem:[%s173] sm:$0xff]
        %v1221 = vld [vmem:[%s173 + $0x8] sm:$0xff]
        %v1222 = vld [vmem:[%s173 + $0x10] sm:$0xff]
        %v1223 = vld [vmem:[%s173 + $0x18] sm:$0xff]
        %1228 = vrot.lane.b32.xlu0 %v1220, 13
        %v1229 = vpop.permute.xlu0 %1228
        %1230 = vrot.lane.b32.xlu0 %v1221, 13
        %v1231 = vpop.permute.xlu0 %1230
        %1232 = vrot.lane.b32.xlu0 %v1222, 13
        %v1233 = vpop.permute.xlu0 %1232
        %1234 = vrot.lane.b32.xlu0 %v1223, 13
        %v1235 = vpop.permute.xlu0 %1234
        %vm1236 = vcmask 105472
        %v1237 = vsel %vm1236, %v1229, %v1231
        %v1238 = vsel %vm1236, %v1231, %v1233
        %v1239 = vsel %vm1236, %v1233, %v1235
        %1243 = vst [vmem:[#allocation2 + $0x3c0] sm:$0xff] %v1237
        %1244 = vst [vmem:[#allocation2 + $0x3c8] sm:$0xff] %v1238
        %1245 = vst [vmem:[#allocation2 + $0x3d0] sm:$0xff] %v1239
        %v1246 = vld [vmem:[%s173] sm:$0xff]
        %v1247 = vld [vmem:[%s173 + $0x8] sm:$0xff]
        %v1248 = vld [vmem:[%s173 + $0x10] sm:$0xff]
        %v1249 = vld [vmem:[%s173 + $0x18] sm:$0xff]
        %1254 = vrot.lane.b32.xlu0 %v1246, 12
        %v1255 = vpop.permute.xlu0 %1254
        %1256 = vrot.lane.b32.xlu0 %v1247, 12
        %v1257 = vpop.permute.xlu0 %1256
        %1258 = vrot.lane.b32.xlu0 %v1248, 12
        %v1259 = vpop.permute.xlu0 %1258
        %1260 = vrot.lane.b32.xlu0 %v1249, 12
        %v1261 = vpop.permute.xlu0 %1260
        %vm1262 = vcmask 97280
        %v1263 = vsel %vm1262, %v1255, %v1257
        %v1264 = vsel %vm1262, %v1257, %v1259
        %v1265 = vsel %vm1262, %v1259, %v1261
        %1269 = vst [vmem:[#allocation2 + $0x3d8] sm:$0xff] %v1263
        %1270 = vst [vmem:[#allocation2 + $0x3e0] sm:$0xff] %v1264
        %1271 = vst [vmem:[#allocation2 + $0x3e8] sm:$0xff] %v1265
        %v1272 = vld [vmem:[%s173 + $0x8] sm:$0xff]
        %v1273 = vld [vmem:[%s173 + $0x10] sm:$0xff]
        %v1274 = vld [vmem:[%s173 + $0x18] sm:$0xff]
        %v1275 = vld [vmem:[%s173 + $0x20] sm:$0xff]
        %1280 = vrot.lane.b32.xlu0 %v1272, 124
        %v1281 = vpop.permute.xlu0 %1280
        %1282 = vrot.lane.b32.xlu0 %v1273, 124
        %v1283 = vpop.permute.xlu0 %1282
        %1284 = vrot.lane.b32.xlu0 %v1274, 124
        %v1285 = vpop.permute.xlu0 %1284
        %1286 = vrot.lane.b32.xlu0 %v1275, 124
        %v1287 = vpop.permute.xlu0 %1286
        %v1288 = vsel %vm300, %v1281, %v1283
        %v1289 = vsel %vm300, %v1283, %v1285
        %v1290 = vsel %vm300, %v1285, %v1287
        %1294 = vst [vmem:[#allocation2 + $0x3f0] sm:$0xff] %v1288
        %1295 = vst [vmem:[#allocation2 + $0x3f8] sm:$0xff] %v1289
        %1296 = vst [vmem:[#allocation2 + $0x400] sm:$0xff] %v1290
        %v1297 = vld [vmem:[%s173 + $0x8] sm:$0xff]
        %v1298 = vld [vmem:[%s173 + $0x10] sm:$0xff]
        %v1299 = vld [vmem:[%s173 + $0x18] sm:$0xff]
        %v1300 = vld [vmem:[%s173 + $0x20] sm:$0xff]
        %1305 = vrot.lane.b32.xlu0 %v1297, 123
        %v1306 = vpop.permute.xlu0 %1305
        %1307 = vrot.lane.b32.xlu0 %v1298, 123
        %v1308 = vpop.permute.xlu0 %1307
        %1309 = vrot.lane.b32.xlu0 %v1299, 123
        %v1310 = vpop.permute.xlu0 %1309
        %1311 = vrot.lane.b32.xlu0 %v1300, 123
        %v1312 = vpop.permute.xlu0 %1311
        %v1313 = vsel %vm326, %v1306, %v1308
        %v1314 = vsel %vm326, %v1308, %v1310
        %v1315 = vsel %vm326, %v1310, %v1312
        %1319 = vst [vmem:[#allocation2 + $0x408] sm:$0xff] %v1313
        %1320 = vst [vmem:[#allocation2 + $0x410] sm:$0xff] %v1314
        %1321 = vst [vmem:[#allocation2 + $0x418] sm:$0xff] %v1315
        %v1322 = vld [vmem:[%s173 + $0x8] sm:$0xff]
        %v1323 = vld [vmem:[%s173 + $0x10] sm:$0xff]
        %v1324 = vld [vmem:[%s173 + $0x18] sm:$0xff]
        %v1325 = vld [vmem:[%s173 + $0x20] sm:$0xff]
        %1330 = vrot.lane.b32.xlu0 %v1322, 122
        %v1331 = vpop.permute.xlu0 %1330
        %1332 = vrot.lane.b32.xlu0 %v1323, 122
        %v1333 = vpop.permute.xlu0 %1332
        %1334 = vrot.lane.b32.xlu0 %v1324, 122
        %v1335 = vpop.permute.xlu0 %1334
        %1336 = vrot.lane.b32.xlu0 %v1325, 122
        %v1337 = vpop.permute.xlu0 %1336
        %v1338 = vsel %vm352, %v1331, %v1333
        %v1339 = vsel %vm352, %v1333, %v1335
        %v1340 = vsel %vm352, %v1335, %v1337
        %1344 = vst [vmem:[#allocation2 + $0x420] sm:$0xff] %v1338
        %1345 = vst [vmem:[#allocation2 + $0x428] sm:$0xff] %v1339
        %1346 = vst [vmem:[#allocation2 + $0x430] sm:$0xff] %v1340
        %v1347 = vld [vmem:[%s173 + $0x8] sm:$0xff]
        %v1348 = vld [vmem:[%s173 + $0x10] sm:$0xff]
        %v1349 = vld [vmem:[%s173 + $0x18] sm:$0xff]
        %v1350 = vld [vmem:[%s173 + $0x20] sm:$0xff]
        %1355 = vrot.lane.b32.xlu0 %v1347, 121
        %v1356 = vpop.permute.xlu0 %1355
        %1357 = vrot.lane.b32.xlu0 %v1348, 121
        %v1358 = vpop.permute.xlu0 %1357
        %1359 = vrot.lane.b32.xlu0 %v1349, 121
        %v1360 = vpop.permute.xlu0 %1359
        %1361 = vrot.lane.b32.xlu0 %v1350, 121
        %v1362 = vpop.permute.xlu0 %1361
        %vm1363 = vcmask 990208
        %v1364 = vsel %vm1363, %v1356, %v1358
        %v1365 = vsel %vm1363, %v1358, %v1360
        %v1366 = vsel %vm1363, %v1360, %v1362
        %1370 = vst [vmem:[#allocation2 + $0x438] sm:$0xff] %v1364
        %1371 = vst [vmem:[#allocation2 + $0x440] sm:$0xff] %v1365
        %1372 = vst [vmem:[#allocation2 + $0x448] sm:$0xff] %v1366
        %v1373 = vld [vmem:[%s173 + $0x8] sm:$0xff]
        %v1374 = vld [vmem:[%s173 + $0x10] sm:$0xff]
        %v1375 = vld [vmem:[%s173 + $0x18] sm:$0xff]
        %v1376 = vld [vmem:[%s173 + $0x20] sm:$0xff]
        %1381 = vrot.lane.b32.xlu0 %v1373, 120
        %v1382 = vpop.permute.xlu0 %1381
        %1383 = vrot.lane.b32.xlu0 %v1374, 120
        %v1384 = vpop.permute.xlu0 %1383
        %1385 = vrot.lane.b32.xlu0 %v1375, 120
        %v1386 = vpop.permute.xlu0 %1385
        %1387 = vrot.lane.b32.xlu0 %v1376, 120
        %v1388 = vpop.permute.xlu0 %1387
        %vm1389 = vcmask 982016
        %v1390 = vsel %vm1389, %v1382, %v1384
        %v1391 = vsel %vm1389, %v1384, %v1386
        %v1392 = vsel %vm1389, %v1386, %v1388
        %1396 = vst [vmem:[#allocation2 + $0x450] sm:$0xff] %v1390
        %1397 = vst [vmem:[#allocation2 + $0x458] sm:$0xff] %v1391
        %1398 = vst [vmem:[#allocation2 + $0x460] sm:$0xff] %v1392
        %v1399 = vld [vmem:[%s173 + $0x8] sm:$0xff]
        %v1400 = vld [vmem:[%s173 + $0x10] sm:$0xff]
        %v1401 = vld [vmem:[%s173 + $0x18] sm:$0xff]
        %v1402 = vld [vmem:[%s173 + $0x20] sm:$0xff]
        %1407 = vrot.lane.b32.xlu0 %v1399, 119
        %v1408 = vpop.permute.xlu0 %1407
        %1409 = vrot.lane.b32.xlu0 %v1400, 119
        %v1410 = vpop.permute.xlu0 %1409
        %1411 = vrot.lane.b32.xlu0 %v1401, 119
        %v1412 = vpop.permute.xlu0 %1411
        %1413 = vrot.lane.b32.xlu0 %v1402, 119
        %v1414 = vpop.permute.xlu0 %1413
        %vm1415 = vcmask 973824
        %v1416 = vsel %vm1415, %v1408, %v1410
        %v1417 = vsel %vm1415, %v1410, %v1412
        %v1418 = vsel %vm1415, %v1412, %v1414
        %1422 = vst [vmem:[#allocation2 + $0x468] sm:$0xff] %v1416
        %1423 = vst [vmem:[#allocation2 + $0x470] sm:$0xff] %v1417
        %1424 = vst [vmem:[#allocation2 + $0x478] sm:$0xff] %v1418
        %v1425 = vld [vmem:[%s173 + $0x8] sm:$0xff]
        %v1426 = vld [vmem:[%s173 + $0x10] sm:$0xff]
        %v1427 = vld [vmem:[%s173 + $0x18] sm:$0xff]
        %v1428 = vld [vmem:[%s173 + $0x20] sm:$0xff]
        %1433 = vrot.lane.b32.xlu0 %v1425, 118
        %v1434 = vpop.permute.xlu0 %1433
        %1435 = vrot.lane.b32.xlu0 %v1426, 118
        %v1436 = vpop.permute.xlu0 %1435
        %1437 = vrot.lane.b32.xlu0 %v1427, 118
        %v1438 = vpop.permute.xlu0 %1437
        %1439 = vrot.lane.b32.xlu0 %v1428, 118
        %v1440 = vpop.permute.xlu0 %1439
        %vm1441 = vcmask 965632
        %v1442 = vsel %vm1441, %v1434, %v1436
        %v1443 = vsel %vm1441, %v1436, %v1438
        %v1444 = vsel %vm1441, %v1438, %v1440
        %1448 = vst [vmem:[#allocation2 + $0x480] sm:$0xff] %v1442
        %1449 = vst [vmem:[#allocation2 + $0x488] sm:$0xff] %v1443
        %1450 = vst [vmem:[#allocation2 + $0x490] sm:$0xff] %v1444
        %v1451 = vld [vmem:[#allocation6] sm:$0xff]
        %v1452 = vld [vmem:[#allocation6 + $0x8] sm:$0xff]
        %v1453 = vld [vmem:[#allocation6 + $0x10] sm:$0xff]
        %v1454 = vld [vmem:[#allocation6 + $0x18] sm:$0xff]
        %v1455 = vld [vmem:[#allocation2] sm:$0xff]
        %v1456 = vld [vmem:[#allocation2 + $0x8] sm:$0xff]
        %v1457 = vld [vmem:[#allocation2 + $0x10] sm:$0xff]
        %v1458 = vld [vmem:[#allocation2 + $0x18] sm:$0xff]
        %v1459 = vld [vmem:[#allocation2 + $0x20] sm:$0xff]
        %v1460 = vld [vmem:[#allocation2 + $0x28] sm:$0xff]
        %v1461 = vld [vmem:[#allocation2 + $0x30] sm:$0xff]
        %v1462 = vld [vmem:[#allocation2 + $0x38] sm:$0xff]
        %v1463 = vld [vmem:[#allocation2 + $0x40] sm:$0xff]
        %v1464 = vld [vmem:[#allocation2 + $0x48] sm:$0xff]
        %v1465 = vld [vmem:[#allocation2 + $0x50] sm:$0xff]
        %v1466 = vld [vmem:[#allocation2 + $0x58] sm:$0xff]
        %v1467 = vld [vmem:[#allocation2 + $0x60] sm:$0xff]
        %v1468 = vld [vmem:[#allocation2 + $0x68] sm:$0xff]
        %v1469 = vld [vmem:[#allocation2 + $0x70] sm:$0xff]
        %v1470 = vld [vmem:[#allocation2 + $0x78] sm:$0xff]
        %v1471 = vld [vmem:[#allocation2 + $0x80] sm:$0xff]
        %v1472 = vld [vmem:[#allocation2 + $0x88] sm:$0xff]
        %v1473 = vld [vmem:[#allocation2 + $0x90] sm:$0xff]
        %v1474 = vld [vmem:[#allocation2 + $0x98] sm:$0xff]
        %v1475 = vld [vmem:[#allocation2 + $0xa0] sm:$0xff]
        %v1476 = vld [vmem:[#allocation2 + $0xa8] sm:$0xff]
        %v1477 = vld [vmem:[#allocation2 + $0xb0] sm:$0xff]
        %v1478 = vld [vmem:[#allocation2 + $0xb8] sm:$0xff]
        %v1479 = vld [vmem:[#allocation2 + $0xc0] sm:$0xff]
        %v1480 = vld [vmem:[#allocation2 + $0xc8] sm:$0xff]
        %v1481 = vld [vmem:[#allocation2 + $0xd0] sm:$0xff]
        %v1482 = vld [vmem:[#allocation2 + $0xd8] sm:$0xff]
        %v1483 = vld [vmem:[#allocation2 + $0xe0] sm:$0xff]
        %v1484 = vld [vmem:[#allocation2 + $0xe8] sm:$0xff]
        %v1485 = vld [vmem:[#allocation2 + $0xf0] sm:$0xff]
        %v1486 = vld [vmem:[#allocation2 + $0xf8] sm:$0xff]
        %v1487 = vld [vmem:[#allocation2 + $0x100] sm:$0xff]
        %v1488 = vld [vmem:[#allocation2 + $0x108] sm:$0xff]
        %v1489 = vld [vmem:[#allocation2 + $0x110] sm:$0xff]
        %v1490 = vld [vmem:[#allocation2 + $0x118] sm:$0xff]
        %v1491 = vld [vmem:[#allocation2 + $0x120] sm:$0xff]
        %v1492 = vld [vmem:[#allocation2 + $0x128] sm:$0xff]
        %v1493 = vld [vmem:[#allocation2 + $0x130] sm:$0xff]
        %v1494 = vld [vmem:[#allocation2 + $0x138] sm:$0xff]
        %v1495 = vld [vmem:[#allocation2 + $0x140] sm:$0xff]
        %v1496 = vld [vmem:[#allocation2 + $0x148] sm:$0xff]
        %v1497 = vld [vmem:[#allocation2 + $0x150] sm:$0xff]
        %v1498 = vld [vmem:[#allocation2 + $0x158] sm:$0xff]
        %v1499 = vld [vmem:[#allocation2 + $0x160] sm:$0xff]
        %v1500 = vld [vmem:[#allocation2 + $0x168] sm:$0xff]
        %v1501 = vld [vmem:[#allocation2 + $0x170] sm:$0xff]
        %v1502 = vld [vmem:[#allocation2 + $0x178] sm:$0xff]
        %v1503 = vld [vmem:[#allocation2 + $0x180] sm:$0xff]
        %v1504 = vld [vmem:[#allocation2 + $0x188] sm:$0xff]
        %v1505 = vld [vmem:[#allocation2 + $0x190] sm:$0xff]
        %v1506 = vld [vmem:[#allocation2 + $0x198] sm:$0xff]
        %v1507 = vld [vmem:[#allocation2 + $0x1a0] sm:$0xff]
        %v1508 = vld [vmem:[#allocation2 + $0x1a8] sm:$0xff]
        %v1509 = vld [vmem:[#allocation2 + $0x1b0] sm:$0xff]
        %v1510 = vld [vmem:[#allocation2 + $0x1b8] sm:$0xff]
        %v1511 = vld [vmem:[#allocation2 + $0x1c0] sm:$0xff]
        %v1512 = vld [vmem:[#allocation2 + $0x1c8] sm:$0xff]
        %v1513 = vld [vmem:[#allocation2 + $0x1d0] sm:$0xff]
        %v1514 = vld [vmem:[#allocation2 + $0x1d8] sm:$0xff]
        %v1515 = vld [vmem:[#allocation2 + $0x1e0] sm:$0xff]
        %v1516 = vld [vmem:[#allocation2 + $0x1e8] sm:$0xff]
        %v1517 = vld [vmem:[#allocation2 + $0x1f0] sm:$0xff]
        %v1518 = vld [vmem:[#allocation2 + $0x1f8] sm:$0xff]
        %v1519 = vld [vmem:[#allocation2 + $0x200] sm:$0xff]
        %v1520 = vld [vmem:[#allocation2 + $0x208] sm:$0xff]
        %v1521 = vld [vmem:[#allocation2 + $0x210] sm:$0xff]
        %v1522 = vld [vmem:[#allocation2 + $0x218] sm:$0xff]
        %v1523 = vld [vmem:[#allocation2 + $0x220] sm:$0xff]
        %v1524 = vld [vmem:[#allocation2 + $0x228] sm:$0xff]
        %v1525 = vld [vmem:[#allocation2 + $0x230] sm:$0xff]
        %v1526 = vld [vmem:[#allocation2 + $0x238] sm:$0xff]
        %v1527 = vld [vmem:[#allocation2 + $0x240] sm:$0xff]
        %v1528 = vld [vmem:[#allocation2 + $0x248] sm:$0xff]
        %v1529 = vld [vmem:[#allocation2 + $0x250] sm:$0xff]
        %v1530 = vld [vmem:[#allocation2 + $0x258] sm:$0xff]
        %v1531 = vld [vmem:[#allocation2 + $0x260] sm:$0xff]
        %v1532 = vld [vmem:[#allocation2 + $0x268] sm:$0xff]
        %v1533 = vld [vmem:[#allocation2 + $0x270] sm:$0xff]
        %v1534 = vld [vmem:[#allocation2 + $0x278] sm:$0xff]
        %v1535 = vld [vmem:[#allocation2 + $0x280] sm:$0xff]
        %v1536 = vld [vmem:[#allocation2 + $0x288] sm:$0xff]
        %v1537 = vld [vmem:[#allocation2 + $0x290] sm:$0xff]
        %v1538 = vld [vmem:[#allocation2 + $0x298] sm:$0xff]
        %v1539 = vld [vmem:[#allocation2 + $0x2a0] sm:$0xff]
        %v1540 = vld [vmem:[#allocation2 + $0x2a8] sm:$0xff]
        %v1541 = vld [vmem:[#allocation2 + $0x2b0] sm:$0xff]
        %v1542 = vld [vmem:[#allocation2 + $0x2b8] sm:$0xff]
        %v1543 = vld [vmem:[#allocation2 + $0x2c0] sm:$0xff]
        %v1544 = vld [vmem:[#allocation2 + $0x2c8] sm:$0xff]
        %v1545 = vld [vmem:[#allocation2 + $0x2d0] sm:$0xff]
        %v1546 = vld [vmem:[#allocation2 + $0x2d8] sm:$0xff]
        %v1547 = vld [vmem:[#allocation2 + $0x2e0] sm:$0xff]
        %v1548 = vld [vmem:[#allocation2 + $0x2e8] sm:$0xff]
        %v1549 = vld [vmem:[#allocation2 + $0x2f0] sm:$0xff]
        %v1550 = vld [vmem:[#allocation2 + $0x2f8] sm:$0xff]
        %v1551 = vld [vmem:[#allocation2 + $0x300] sm:$0xff]
        %v1552 = vld [vmem:[#allocation2 + $0x308] sm:$0xff]
        %v1553 = vld [vmem:[#allocation2 + $0x310] sm:$0xff]
        %v1554 = vld [vmem:[#allocation2 + $0x318] sm:$0xff]
        %v1555 = vld [vmem:[#allocation2 + $0x320] sm:$0xff]
        %v1556 = vld [vmem:[#allocation2 + $0x328] sm:$0xff]
        %v1557 = vld [vmem:[#allocation2 + $0x330] sm:$0xff]
        %v1558 = vld [vmem:[#allocation2 + $0x338] sm:$0xff]
        %v1559 = vld [vmem:[#allocation2 + $0x340] sm:$0xff]
        %v1560 = vld [vmem:[#allocation2 + $0x348] sm:$0xff]
        %v1561 = vld [vmem:[#allocation2 + $0x350] sm:$0xff]
        %v1562 = vld [vmem:[#allocation2 + $0x358] sm:$0xff]
        %v1563 = vld [vmem:[#allocation2 + $0x360] sm:$0xff]
        %v1564 = vld [vmem:[#allocation2 + $0x368] sm:$0xff]
        %v1565 = vld [vmem:[#allocation2 + $0x370] sm:$0xff]
        %v1566 = vld [vmem:[#allocation2 + $0x378] sm:$0xff]
        %v1567 = vld [vmem:[#allocation2 + $0x380] sm:$0xff]
        %v1568 = vld [vmem:[#allocation2 + $0x388] sm:$0xff]
        %v1569 = vld [vmem:[#allocation2 + $0x390] sm:$0xff]
        %v1570 = vld [vmem:[#allocation2 + $0x398] sm:$0xff]
        %v1571 = vld [vmem:[#allocation2 + $0x3a0] sm:$0xff]
        %v1572 = vld [vmem:[#allocation2 + $0x3a8] sm:$0xff]
        %v1573 = vld [vmem:[#allocation2 + $0x3b0] sm:$0xff]
        %v1574 = vld [vmem:[#allocation2 + $0x3b8] sm:$0xff]
        %v1575 = vld [vmem:[#allocation2 + $0x3c0] sm:$0xff]
        %v1576 = vld [vmem:[#allocation2 + $0x3c8] sm:$0xff]
        %v1577 = vld [vmem:[#allocation2 + $0x3d0] sm:$0xff]
        %v1578 = vld [vmem:[#allocation2 + $0x3d8] sm:$0xff]
        %v1579 = vld [vmem:[#allocation2 + $0x3e0] sm:$0xff]
        %v1580 = vld [vmem:[#allocation2 + $0x3e8] sm:$0xff]
        %v1581 = vld [vmem:[#allocation2 + $0x3f0] sm:$0xff]
        %v1582 = vld [vmem:[#allocation2 + $0x3f8] sm:$0xff]
        %v1583 = vld [vmem:[#allocation2 + $0x400] sm:$0xff]
        %v1584 = vld [vmem:[#allocation2 + $0x408] sm:$0xff]
        %v1585 = vld [vmem:[#allocation2 + $0x410] sm:$0xff]
        %v1586 = vld [vmem:[#allocation2 + $0x418] sm:$0xff]
        %v1587 = vld [vmem:[#allocation2 + $0x420] sm:$0xff]
        %v1588 = vld [vmem:[#allocation2 + $0x428] sm:$0xff]
        %v1589 = vld [vmem:[#allocation2 + $0x430] sm:$0xff]
        %v1590 = vld [vmem:[#allocation2 + $0x438] sm:$0xff]
        %v1591 = vld [vmem:[#allocation2 + $0x440] sm:$0xff]
        %v1592 = vld [vmem:[#allocation2 + $0x448] sm:$0xff]
        %v1593 = vld [vmem:[#allocation2 + $0x450] sm:$0xff]
        %v1594 = vld [vmem:[#allocation2 + $0x458] sm:$0xff]
        %v1595 = vld [vmem:[#allocation2 + $0x460] sm:$0xff]
        %v1596 = vld [vmem:[#allocation2 + $0x468] sm:$0xff]
        %v1597 = vld [vmem:[#allocation2 + $0x470] sm:$0xff]
        %v1598 = vld [vmem:[#allocation2 + $0x478] sm:$0xff]
        %v1599 = vld [vmem:[#allocation2 + $0x480] sm:$0xff]
        %v1600 = vld [vmem:[#allocation2 + $0x488] sm:$0xff]
        %v1601 = vld [vmem:[#allocation2 + $0x490] sm:$0xff]
        %v1602 = vld [vmem:[%s2] sm:$0xff]
        %1604 = vset.pattern.permute.xlu0 0
        %1605 = vperm.xlu0 %1604, %v1602
        %v1606 = vpop.permute.xlu0 %1605
        %vm1608 = vcmask 64512
        %v1610 = vsel %vm1608, %v1454, 0
        %1612 = vmatprep.subr.mxu0 %v1456
        %1613 = vmatpush1.msra.mxu0 %v1455
        %1614 = vmatprep.subr.mxu0 %v1459
        %1615 = vmatpush1.msra.mxu0 %v1458
        %1616 = vmatprep.subr.mxu0 %v1462
        %1617 = vmatpush1.msra.mxu0 %v1461
        %1618 = vmatprep.subr.mxu0 %v1465
        %1619 = vmatpush1.msra.mxu0 %v1464
        %1620 = vmatprep.subr.mxu0 %v1468
        %1621 = vmatpush1.msra.mxu0 %v1467
        %1622 = vmatprep.subr.mxu0 %v1471
        %1623 = vmatpush1.msra.mxu0 %v1470
        %1624 = vmatprep.subr.mxu0 %v1474
        %1625 = vmatpush1.msra.mxu0 %v1473
        %1626 = vmatprep.subr.mxu0 %v1477
        %1627 = vmatpush1.msra.mxu0 %v1476
        %1628 = vmatprep.subr.mxu0 %v1480
        %1629 = vmatpush1.msra.mxu0 %v1479
        %1630 = vmatprep.subr.mxu0 %v1483
        %1631 = vmatpush1.msra.mxu0 %v1482
        %1632 = vmatprep.subr.mxu0 %v1486
        %1633 = vmatpush1.msra.mxu0 %v1485
        %1634 = vmatprep.subr.mxu0 %v1489
        %1635 = vmatpush1.msra.mxu0 %v1488
        %1636 = vmatprep.subr.mxu0 %v1492
        %1637 = vmatpush1.msra.mxu0 %v1491
        %1638 = vmatprep.subr.mxu0 %v1495
        %1639 = vmatpush1.msra.mxu0 %v1494
        %1640 = vmatprep.subr.mxu0 %v1498
        %1641 = vmatpush1.msra.mxu0 %v1497
        %1642 = vmatprep.subr.mxu0 %v1501
        %1643 = vmatpush1.msra.mxu0 %v1500
        %1644 = vmatprep.subr.mxu0 %v1504
        %1645 = vmatpush1.msra.mxu0 %v1503
        %1646 = vmatprep.subr.mxu0 %v1507
        %1647 = vmatpush1.msra.mxu0 %v1506
        %1648 = vmatprep.subr.mxu0 %v1510
        %1649 = vmatpush1.msra.mxu0 %v1509
        %1650 = vmatprep.subr.mxu0 %v1513
        %1651 = vmatpush1.msra.mxu0 %v1512
        %1652 = vmatprep.subr.mxu0 %v1516
        %1653 = vmatpush1.msra.mxu0 %v1515
        %1654 = vmatprep.subr.mxu0 %v1519
        %1655 = vmatpush1.msra.mxu0 %v1518
        %1656 = vmatprep.subr.mxu0 %v1522
        %1657 = vmatpush1.msra.mxu0 %v1521
        %1658 = vmatprep.subr.mxu0 %v1525
        %1659 = vmatpush1.msra.mxu0 %v1524
        %1660 = vmatprep.subr.mxu0 %v1528
        %1661 = vmatpush1.msra.mxu0 %v1527
        %1662 = vmatprep.subr.mxu0 %v1531
        %1663 = vmatpush1.msra.mxu0 %v1530
        %1664 = vmatprep.subr.mxu0 %v1534
        %1665 = vmatpush1.msra.mxu0 %v1533
        %1666 = vmatprep.subr.mxu0 %v1537
        %1667 = vmatpush1.msra.mxu0 %v1536
        %1668 = vmatprep.subr.mxu0 %v1540
        %1669 = vmatpush1.msra.mxu0 %v1539
        %1670 = vmatprep.subr.mxu0 %v1543
        %1671 = vmatpush1.msra.mxu0 %v1542
        %1672 = vmatprep.subr.mxu0 %v1546
        %1673 = vmatpush1.msra.mxu0 %v1545
        %1674 = vmatprep.subr.mxu0 %v1549
        %1675 = vmatpush1.msra.mxu0 %v1548
        %1676 = vmatprep.mubr.f32.mxu0 %v1452
        %1677 = vmatmul.mubr.f32.gmra.mrb[0].mxu0 %v1451
        %v1678 = vpop.f32.mrb[0].mxu0
        %v1679 = vadd.f32 %v1606, %v1678
        %v1680 = vpop.f32.mrb[0].mxu0
        %v1681 = vadd.f32 %v1606, %v1680
        %1682 = vdwg.mxu0
        %1683 = vmatprep.subr.mxu0 %v1552
        %1684 = vmatpush1.msra.mxu0 %v1551
        %1685 = vmatprep.subr.mxu0 %v1555
        %1686 = vmatpush1.msra.mxu0 %v1554
        %1687 = vmatprep.subr.mxu0 %v1558
        %1688 = vmatpush1.msra.mxu0 %v1557
        %1689 = vmatprep.subr.mxu0 %v1561
        %1690 = vmatpush1.msra.mxu0 %v1560
        %1691 = vmatprep.subr.mxu0 %v1564
        %1692 = vmatpush1.msra.mxu0 %v1563
        %1693 = vmatprep.subr.mxu0 %v1567
        %1694 = vmatpush1.msra.mxu0 %v1566
        %1695 = vmatprep.subr.mxu0 %v1570
        %1696 = vmatpush1.msra.mxu0 %v1569
        %1697 = vmatprep.subr.mxu0 %v1573
        %1698 = vmatpush1.msra.mxu0 %v1572
        %1699 = vmatprep.subr.mxu0 %v1576
        %1700 = vmatpush1.msra.mxu0 %v1575
        %1701 = vmatprep.subr.mxu0 %v1579
        %1702 = vmatpush1.msra.mxu0 %v1578
        %1703 = vmatprep.subr.mxu0 %v1582
        %1704 = vmatpush1.msra.mxu0 %v1581
        %1705 = vmatprep.subr.mxu0 %v1585
        %1706 = vmatpush1.msra.mxu0 %v1584
        %1707 = vmatprep.subr.mxu0 %v1588
        %1708 = vmatpush1.msra.mxu0 %v1587
        %1709 = vmatprep.subr.mxu0 %v1591
        %1710 = vmatpush1.msra.mxu0 %v1590
        %1711 = vmatprep.subr.mxu0 %v1594
        %1712 = vmatpush1.msra.mxu0 %v1593
        %1713 = vmatprep.subr.mxu0 %v1597
        %1714 = vmatpush1.msra.mxu0 %v1596
        %1715 = vmatprep.subr.mxu0 %v1600
        %1716 = vmatpush1.msra.mxu0 %v1599
        %1717 = vmatprep.subr.mxu0 0.0
        %1718 = vmatpush1.msra.mxu0 0.0
        %1719 = vmatprep.subr.mxu0 0.0
        %1720 = vmatpush1.msra.mxu0 0.0
        %1721 = vmatprep.subr.mxu0 0.0
        %1722 = vmatpush1.msra.mxu0 0.0
        %1723 = vmatprep.subr.mxu0 0.0
        %1724 = vmatpush1.msra.mxu0 0.0
        %1725 = vmatprep.subr.mxu0 0.0
        %1726 = vmatpush1.msra.mxu0 0.0
        %1727 = vmatprep.subr.mxu0 0.0
        %1728 = vmatpush1.msra.mxu0 0.0
        %1729 = vmatprep.subr.mxu0 0.0
        %1730 = vmatpush1.msra.mxu0 0.0
        %1731 = vmatprep.subr.mxu0 0.0
        %1732 = vmatpush1.msra.mxu0 0.0
        %1733 = vmatprep.subr.mxu0 0.0
        %1734 = vmatpush1.msra.mxu0 0.0
        %1735 = vmatprep.subr.mxu0 0.0
        %1736 = vmatpush1.msra.mxu0 0.0
        %1737 = vmatprep.subr.mxu0 0.0
        %1738 = vmatpush1.msra.mxu0 0.0
        %1739 = vmatprep.subr.mxu0 0.0
        %1740 = vmatpush1.msra.mxu0 0.0
        %1741 = vmatprep.subr.mxu0 0.0
        %1742 = vmatpush1.msra.mxu0 0.0
        %1743 = vmatprep.subr.mxu0 0.0
        %1744 = vmatpush1.msra.mxu0 0.0
        %1745 = vmatprep.subr.mxu0 0.0
        %1746 = vmatpush1.msra.mxu0 0.0
        %1747 = vmatprep.mubr.f32.mxu0 %v1610
        %1748 = vmatmul.mubr.f32.gmra.mrb[0].mxu0 %v1453
        %v1749 = vpop.f32.mrb[0].mxu0
        %v1750 = vadd.f32 %v1679, %v1749
        %v1751 = vpop.f32.mrb[0].mxu0
        %v1752 = vadd.f32 %v1681, %v1751
        %1753 = vdwg.mxu0
        %1754 = vmatprep.subr.mxu0 0.0
        %1755 = vmatpush1.msra.mxu0 %v1457
        %1756 = vmatprep.subr.mxu0 0.0
        %1757 = vmatpush1.msra.mxu0 %v1460
        %1758 = vmatprep.subr.mxu0 0.0
        %1759 = vmatpush1.msra.mxu0 %v1463
        %1760 = vmatprep.subr.mxu0 0.0
        %1761 = vmatpush1.msra.mxu0 %v1466
        %1762 = vmatprep.subr.mxu0 0.0
        %1763 = vmatpush1.msra.mxu0 %v1469
        %1764 = vmatprep.subr.mxu0 0.0
        %1765 = vmatpush1.msra.mxu0 %v1472
        %1766 = vmatprep.subr.mxu0 0.0
        %1767 = vmatpush1.msra.mxu0 %v1475
        %1768 = vmatprep.subr.mxu0 0.0
        %1769 = vmatpush1.msra.mxu0 %v1478
        %1770 = vmatprep.subr.mxu0 0.0
        %1771 = vmatpush1.msra.mxu0 %v1481
        %1772 = vmatprep.subr.mxu0 0.0
        %1773 = vmatpush1.msra.mxu0 %v1484
        %1774 = vmatprep.subr.mxu0 0.0
        %1775 = vmatpush1.msra.mxu0 %v1487
        %1776 = vmatprep.subr.mxu0 0.0
        %1777 = vmatpush1.msra.mxu0 %v1490
        %1778 = vmatprep.subr.mxu0 0.0
        %1779 = vmatpush1.msra.mxu0 %v1493
        %1780 = vmatprep.subr.mxu0 0.0
        %1781 = vmatpush1.msra.mxu0 %v1496
        %1782 = vmatprep.subr.mxu0 0.0
        %1783 = vmatpush1.msra.mxu0 %v1499
        %1784 = vmatprep.subr.mxu0 0.0
        %1785 = vmatpush1.msra.mxu0 %v1502
        %1786 = vmatprep.subr.mxu0 0.0
        %1787 = vmatpush1.msra.mxu0 %v1505
        %1788 = vmatprep.subr.mxu0 0.0
        %1789 = vmatpush1.msra.mxu0 %v1508
        %1790 = vmatprep.subr.mxu0 0.0
        %1791 = vmatpush1.msra.mxu0 %v1511
        %1792 = vmatprep.subr.mxu0 0.0
        %1793 = vmatpush1.msra.mxu0 %v1514
        %1794 = vmatprep.subr.mxu0 0.0
        %1795 = vmatpush1.msra.mxu0 %v1517
        %1796 = vmatprep.subr.mxu0 0.0
        %1797 = vmatpush1.msra.mxu0 %v1520
        %1798 = vmatprep.subr.mxu0 0.0
        %1799 = vmatpush1.msra.mxu0 %v1523
        %1800 = vmatprep.subr.mxu0 0.0
        %1801 = vmatpush1.msra.mxu0 %v1526
        %1802 = vmatprep.subr.mxu0 0.0
        %1803 = vmatpush1.msra.mxu0 %v1529
        %1804 = vmatprep.subr.mxu0 0.0
        %1805 = vmatpush1.msra.mxu0 %v1532
        %1806 = vmatprep.subr.mxu0 0.0
        %1807 = vmatpush1.msra.mxu0 %v1535
        %1808 = vmatprep.subr.mxu0 0.0
        %1809 = vmatpush1.msra.mxu0 %v1538
        %1810 = vmatprep.subr.mxu0 0.0
        %1811 = vmatpush1.msra.mxu0 %v1541
        %1812 = vmatprep.subr.mxu0 0.0
        %1813 = vmatpush1.msra.mxu0 %v1544
        %1814 = vmatprep.subr.mxu0 0.0
        %1815 = vmatpush1.msra.mxu0 %v1547
        %1816 = vmatprep.subr.mxu0 0.0
        %1817 = vmatpush1.msra.mxu0 %v1550
        %1818 = vmatprep.mubr.f32.mxu0 %v1452
        %1819 = vmatmul.mubr.f32.gmra.mrb[0].mxu0 %v1451
        %v1820 = vpop.f32.mrb[0].mxu0
        %v1821 = vadd.f32 %v1606, %v1820
        %v1822 = vpop.f32.mrb[0].mxu0
        %1823 = vdwg.mxu0
        %1824 = vmatprep.subr.mxu0 0.0
        %1825 = vmatpush1.msra.mxu0 %v1553
        %1826 = vmatprep.subr.mxu0 0.0
        %1827 = vmatpush1.msra.mxu0 %v1556
        %1828 = vmatprep.subr.mxu0 0.0
        %1829 = vmatpush1.msra.mxu0 %v1559
        %1830 = vmatprep.subr.mxu0 0.0
        %1831 = vmatpush1.msra.mxu0 %v1562
        %1832 = vmatprep.subr.mxu0 0.0
        %1833 = vmatpush1.msra.mxu0 %v1565
        %1834 = vmatprep.subr.mxu0 0.0
        %1835 = vmatpush1.msra.mxu0 %v1568
        %1836 = vmatprep.subr.mxu0 0.0
        %1837 = vmatpush1.msra.mxu0 %v1571
        %1838 = vmatprep.subr.mxu0 0.0
        %1839 = vmatpush1.msra.mxu0 %v1574
        %1840 = vmatprep.subr.mxu0 0.0
        %1841 = vmatpush1.msra.mxu0 %v1577
        %1842 = vmatprep.subr.mxu0 0.0
        %1843 = vmatpush1.msra.mxu0 %v1580
        %1844 = vmatprep.subr.mxu0 0.0
        %1845 = vmatpush1.msra.mxu0 %v1583
        %1846 = vmatprep.subr.mxu0 0.0
        %1847 = vmatpush1.msra.mxu0 %v1586
        %1848 = vmatprep.subr.mxu0 0.0
        %1849 = vmatpush1.msra.mxu0 %v1589
        %1850 = vmatprep.subr.mxu0 0.0
        %1851 = vmatpush1.msra.mxu0 %v1592
        %1852 = vmatprep.subr.mxu0 0.0
        %1853 = vmatpush1.msra.mxu0 %v1595
        %1854 = vmatprep.subr.mxu0 0.0
        %1855 = vmatpush1.msra.mxu0 %v1598
        %1856 = vmatprep.subr.mxu0 0.0
        %1857 = vmatpush1.msra.mxu0 %v1601
        %1858 = vmatprep.subr.mxu0 0.0
        %1859 = vmatpush1.msra.mxu0 0.0
        %1860 = vmatprep.subr.mxu0 0.0
        %1861 = vmatpush1.msra.mxu0 0.0
        %1862 = vmatprep.subr.mxu0 0.0
        %1863 = vmatpush1.msra.mxu0 0.0
        %1864 = vmatprep.subr.mxu0 0.0
        %1865 = vmatpush1.msra.mxu0 0.0
        %1866 = vmatprep.subr.mxu0 0.0
        %1867 = vmatpush1.msra.mxu0 0.0
        %1868 = vmatprep.subr.mxu0 0.0
        %1869 = vmatpush1.msra.mxu0 0.0
        %1870 = vmatprep.subr.mxu0 0.0
        %1871 = vmatpush1.msra.mxu0 0.0
        %1872 = vmatprep.subr.mxu0 0.0
        %1873 = vmatpush1.msra.mxu0 0.0
        %1874 = vmatprep.subr.mxu0 0.0
        %1875 = vmatpush1.msra.mxu0 0.0
        %1876 = vmatprep.subr.mxu0 0.0
        %1877 = vmatpush1.msra.mxu0 0.0
        %1878 = vmatprep.subr.mxu0 0.0
        %1879 = vmatpush1.msra.mxu0 0.0
        %1880 = vmatprep.subr.mxu0 0.0
        %1881 = vmatpush1.msra.mxu0 0.0
        %1882 = vmatprep.subr.mxu0 0.0
        %1883 = vmatpush1.msra.mxu0 0.0
        %1884 = vmatprep.subr.mxu0 0.0
        %1885 = vmatpush1.msra.mxu0 0.0
        %1886 = vmatprep.subr.mxu0 0.0
        %1887 = vmatpush1.msra.mxu0 0.0
        %1888 = vmatprep.mubr.f32.mxu0 %v1610
        %1889 = vmatmul.mubr.f32.gmra.mrb[0].mxu0 %v1453
        %v1890 = vpop.f32.mrb[0].mxu0
        %v1891 = vadd.f32 %v1821, %v1890
        %v1892 = vpop.f32.mrb[0].mxu0
        %1893 = vdwg.mxu0
        %1894 = vst [vmem:[%s199] sm:$0xff] %v1750
        %1895 = vst [vmem:[%s199 + $0x8] sm:$0xff] %v1752
        %1896 = vst [vmem:[%s199 + $0x10] sm:$0xff] %v1891
        %s1897 = sand.u32 %s97, 1
        %s1898 = scalar_lea.sflag [#allocation5], %s1897
        %s1899 = sand.u32 %s97, 1
        %s1900 = smul.addr %s1899, 24
        %s1901 = scalar_lea.vmem [#allocation8], %s1900
        // Predicated region
        $region41: #{tpu_custom_call.1} parent=31 // pred_check
          %p1902 = pneg %p107
        $region42: #{tpu_custom_call.1} parent=31 // pred_check_branch
          %1904 = sbr.rel (%p1902) target = $region44
        $region43: #{tpu_custom_call.1} parent=31 // pred_region
          %s1906 = ssub.s32 384, 384
          %1907 = vsyncadd %s1898, %s1906
          %s1908 = smul.addr %s21, 3
          %s1909 = smul.addr %s1908, 128
          %s1910 = scalar_lea.hbm %s3, %s1909
          %s1912 = sshll.u32 %s1901, 4
          %s1913 = int_to_ptr.vmem [resolvable:$true] %s1912
          %1915 = dma.vmem_to_hbm [thread:$0]  %s1913, 384, %s1910, %s1898
        $region44: #{tpu_custom_call.1} parent=31 // pred_fallthru
          _
      $region32: #{tpu_custom_call.1} parent=5 // pred_fallthru
        _
      %p1916 = scmp.le.s32.totalorder 2, %s16
      // Predicated region
      $region45: #{tpu_custom_call.1} parent=5 // pred_check
        %p1917 = pneg %p1916
      $region46: #{tpu_custom_call.1} parent=5 // pred_check_branch
        %1919 = sbr.rel (%p1917) target = $region48
      $region47: #{tpu_custom_call.1} parent=5 // pred_region
        %s1920 = ssub.s32 %s16, 2
        // Predicated region
        $region49: #{tpu_custom_call.1} parent=47 // pred_check
          %p1921 = pneg %p113
        $region50: #{tpu_custom_call.1} parent=47 // pred_check_branch
          %1923 = sbr.rel (%p1921) target = $region52
        $region51: #{tpu_custom_call.1} parent=47 // pred_region
          %s1924 = sand.u32 %s98, 1
          %s1925 = scalar_lea.sflag [#allocation5], %s1924
          %s1926 = sand.u32 %s98, 1
          %s1927 = smul.addr %s1926, 24
          %s1928 = scalar_lea.vmem [#allocation8], %s1927
          %1929 = dma.done %s1925, 384
        $region52: #{tpu_custom_call.1} parent=47 // pred_fallthru
          _
      $region48: #{tpu_custom_call.1} parent=5 // pred_fallthru
        _
    $region6: #{tpu_custom_call.1} parent=1 // loop_footer
      %s20 = sadd.s32 1, %s16
    $region7: #{tpu_custom_call.1} parent=1 // loop_footer_branch
      %15 = sbr.rel target = $region3
    $region8: #{tpu_custom_call.1} parent=1 // loop_exit
      _
    %1930 = vsyncpa [#allocation4], 1
    %s1931 = scalar_lea.sflag [#allocation4], 1
    %1932 = vsyncpa %s1931, 1
    %1933 = vsyncpa [#allocation7], 1
    %1934 = vsyncpa [#allocation5], 1
    %s1935 = scalar_lea.sflag [#allocation5], 1
    %1936 = vsyncpa %s1935, 1

</llo_original>
